<compile_context>
chip_gen: v7x
topology: tpu7x:2x2x1
jax: 0.10.0
libtpu: 0.0.40
codegen_flags: <defaults>
</compile_context>

<pallas_src>
import functools

import jax
import jax.numpy as jnp
from jax.experimental import pallas as pl
from jax.experimental.pallas import tpu as pltpu

KSIZE = 3
PAD = KSIZE // 2
NTAPS = KSIZE * KSIZE
BN_EPS = 1e-5
# (dh, dw) offsets of the 3x3 window in (kh, kw) row-major order (matches OIHW weight order).
TAPS = tuple((kh - PAD, kw - PAD) for kh in range(KSIZE) for kw in range(KSIZE))


def _round_up(n, m):
    return ((n + m - 1) // m) * m


def _cbatten_res_kernel(x_ref, mask_ref, w_ref, bias_ref, wat_ref, wb_ref, wsa_ref,
                        o_ref, slab_ref, *, H, W, Cout, Bt):
    # x_ref:    (Bt, Cin_p, HW)            VMEM  f32 input slab (lane-dense, channel-padded)
    # mask_ref: (9, HW)                    VMEM  f32 0/1 boundary masks, one row per 3x3 tap
    # w_ref:    (2*Cout_p, 10*Cin_p)       VMEM  bf16 fused weight [conv1(+BN) | 0 ; 0 | res 1x1]
    # bias_ref: (2*Cout_p, 1)              VMEM  f32 fused bias [conv1(+BN) ; res]
    # wat_ref:  (Cout_p, Cmid)             VMEM  channel-attn MLP W1^T (zero-padded rows)
    # wb_ref:   (Cout_p, Cmid)             VMEM  channel-attn MLP W2   (zero-padded rows)
    # wsa_ref:  (2*9,)                     SMEM  spatial-attn 3x3 weights, flat [tap, cin(avg,max)]
    # o_ref:    (Bt, Cout_p, HW)           VMEM  f32 output slab
    # slab_ref: (10*Cin_p, Bt*HW)          VMEM  f32 scratch: im2col slab + max-pooled rows
    HW = H * W
    Cin_p = x_ref.shape[1]
    Cout_p = o_ref.shape[1]

    masks = [mask_ref[t:t + 1, :] for t in range(NTAPS)]        # hoisted (1, HW) loads

    # ---- 1) im2col slab + residual 3x3 max-pool (shares the rolled views), per batch element ----
    for b in range(Bt):
        xb = x_ref[b]                                            # (Cin_p, HW)
        pooled = xb                                              # centre tap (always valid)
        for t, (dh, dw) in enumerate(TAPS):
            if (dh, dw) == (0, 0):
                rolled = xb
            else:
                rolled = pltpu.roll(xb, shift=(-(dh * W + dw)) % HW, axis=1)
            # aligned store: rows are multiples of Cin_p (mult of 8), lanes multiples of HW (mult of 128)
            slab_ref[t * Cin_p:(t + 1) * Cin_p, b * HW:(b + 1) * HW] = rolled * masks[t]
            if (dh, dw) != (0, 0):
                pooled = jnp.maximum(pooled, jnp.where(masks[t] > 0.5, rolled, -jnp.inf))
        slab_ref[NTAPS * Cin_p:, b * HW:(b + 1) * HW] = pooled

    # ---- 2) single fused MXU matmul: [conv1(+BN) ; residual 1x1 conv], bf16 operands, f32 acc ----
    out2 = jnp.dot(w_ref[...], slab_ref[...].astype(jnp.bfloat16),
                   preferred_element_type=jnp.float32) + bias_ref[...]       # (2*Cout_p, Bt*HW)

    wat = wat_ref[...]                                           # (Cout_p, Cmid) = W1^T (padded)
    wb = wb_ref[...]                                             # (Cout_p, Cmid) = W2   (padded)
    inv_c = 1.0 / float(Cout)                                    # true channel count (not padded)

    def shared_mlp(v):                                           # v: (Cout_p, 1) -> (Cout_p, 1)
        u = jnp.maximum(jnp.sum(wat * v, axis=0, keepdims=True), 0.0)        # (1, Cmid)
        return jnp.sum(wb * u, axis=1, keepdims=True)                        # (Cout_p, 1)

    # ---- 3) channel/spatial attention + residual + final ReLU, per batch element ----
    for b in range(Bt):
        cols = slice(b * HW, (b + 1) * HW)
        h = jnp.maximum(out2[:Cout_p, cols], 0.0)                # conv1 + BN + ReLU  (Cout_p, HW)
        res = out2[Cout_p:, cols]                                # residual branch    (Cout_p, HW)

        # ChannelAttention: sigmoid(MLP(avg) + MLP(max))  (padded channels stay exactly 0)
        avg_c = jnp.mean(h, axis=1, keepdims=True)               # (Cout_p, 1)
        max_c = jnp.max(h, axis=1, keepdims=True)
        h = h * jax.nn.sigmoid(shared_mlp(avg_c) + shared_mlp(max_c))

        # SpatialAttention: combine avg/max maps with their tap weights BEFORE the roll
        # (roll is linear) -> 9 single-row rolls instead of 18.
        avg_s = jnp.sum(h, axis=0, keepdims=True) * inv_c        # (1, HW)  padded rows are 0
        max_s = jnp.max(h, axis=0, keepdims=True)                # (1, HW)  h >= 0, zeros harmless
        sa_a = jnp.zeros((1, HW), jnp.float32)                   # two independent accumulators
        sa_b = jnp.zeros((1, HW), jnp.float32)
        for t, (dh, dw) in enumerate(TAPS):
            comb = wsa_ref[2 * t] * avg_s + wsa_ref[2 * t + 1] * max_s
            if (dh, dw) != (0, 0):
                comb = pltpu.roll(comb, shift=(-(dh * W + dw)) % HW, axis=1)
            comb = comb * masks[t]
            if t % 2 == 0:
                sa_a = sa_a + comb
            else:
                sa_b = sa_b + comb
        h = h * jax.nn.sigmoid(sa_a + sa_b)

        o_ref[b] = jnp.maximum(h + res, 0.0).astype(o_ref.dtype)


def cbatten_res(x, params, *, vmem_budget_bytes=40 * 1024 * 1024):
    """x: (B, Cin, H, W) float32; params: dict of CBAtten_Res weights (see __main__)."""
    B, Cin, H, W = x.shape
    HW = H * W
    assert HW % 128 == 0, "H*W must be a multiple of 128 for the lane-dense layout"
    Cout = params["conv1_w"].shape[0]
    Cmid = params["ca_w1"].shape[0]
    f32 = jnp.float32

    Cin_p = _round_up(Cin, 8)
    Cout_p = _round_up(Cout, 8)
    K = (NTAPS + 1) * Cin_p                                      # fused contraction dim

    # ---- fold eval-mode BatchNorm into conv1: w' = w*g/sqrt(v+eps), b' = (b-mean)*g/sqrt(v+eps)+beta ----
    s = params["bn_gamma"] * jax.lax.rsqrt(params["bn_var"] + BN_EPS)          # (Cout,)
    w1f = params["conv1_w"].astype(f32) * s[:, None, None, None]               # (Cout,Cin,3,3)
    b1f = (params["conv1_b"] - params["bn_mean"]) * s + params["bn_beta"]      # (Cout,)

    # ---- fused block-diagonal weight: rows [0:Cout_p]=conv1 taps, rows [Cout_p:]=residual 1x1 ----
    w1_pad = jnp.zeros((Cout_p, Cin_p, KSIZE, KSIZE), f32).at[:Cout, :Cin].set(w1f)
    w1_mat = jnp.transpose(w1_pad, (0, 2, 3, 1)).reshape(Cout_p, NTAPS * Cin_p)   # col = tap*Cin_p + c
    wr_pad = jnp.zeros((Cout_p, Cin_p), f32).at[:Cout, :Cin].set(
        params["res_w"].reshape(Cout, Cin).astype(f32))
    w_big = jnp.zeros((2 * Cout_p, K), f32)
    w_big = w_big.at[:Cout_p, :NTAPS * Cin_p].set(w1_mat)
    w_big = w_big.at[Cout_p:, NTAPS * Cin_p:].set(wr_pad)
    w_big = w_big.astype(jnp.bfloat16)                                         # MXU-native operand

    bias_big = jnp.zeros((2 * Cout_p, 1), f32)
    bias_big = bias_big.at[:Cout, 0].set(b1f.astype(f32))
    bias_big = bias_big.at[Cout_p:Cout_p + Cout, 0].set(params["res_b"].astype(f32))

    wat = jnp.zeros((Cout_p, Cmid), f32).at[:Cout].set(params["ca_w1"].T.astype(f32))  # W1^T
    wb = jnp.zeros((Cout_p, Cmid), f32).at[:Cout].set(params["ca_w2"].astype(f32))     # W2
    # spatial-attn weights flat as [tap, cin(avg,max)] -> index 2*t + cin
    wsa = jnp.transpose(params["sa_w"][0], (1, 2, 0)).reshape(-1).astype(f32)           # (18,)

    # ---- 0/1 boundary masks for the 9 taps of a 3x3 'same' window, flattened to H*W ----
    hh = jnp.arange(H)[:, None]
    ww = jnp.arange(W)[None, :]
    mask_rows = []
    for dh, dw in TAPS:
        valid = (hh + dh >= 0) & (hh + dh < H) & (ww + dw >= 0) & (ww + dw < W)
        mask_rows.append(valid.reshape(HW))
    mask_arr = jnp.stack(mask_rows, axis=0).astype(f32)                                 # (9, HW)

    # lane-dense, channel-padded input slab
    x_pad = jnp.pad(x.astype(f32).reshape(B, Cin, HW), ((0, 0), (0, Cin_p - Cin), (0, 0)))

    # ---- batch tile: fold Bt images into the matmul N dimension, sized against a VMEM budget ----
    def _step_bytes(bt):
        n = bt * HW
        return (2 * Cin_p * n * 4            # x block (double-buffered)
                + 2 * Cout_p * n * 4         # out block (double-buffered)
                + K * n * 4 + K * n * 2      # f32 slab scratch + bf16 copy
                + 6 * Cout_p * n * 4         # matmul result / h / res temporaries
                + 2 * NTAPS * HW * 4)        # masks
    Bt = B
    while Bt > 1 and (B % Bt != 0 or _step_bytes(Bt) > vmem_budget_bytes):
        Bt -= 1

    flops = int(2 * (2 * Cout_p) * K * B * HW
                + B * HW * (NTAPS * (2 * Cin_p + 2) + 10 * Cout_p + 6 * NTAPS))
    transcendentals = int(B * (HW + 2 * Cout_p))
    bytes_accessed = int(4 * B * HW * (Cin_p + Cout_p)
                         + (B // Bt) * (4 * NTAPS * HW + 2 * 2 * Cout_p * K
                                        + 4 * (2 * Cout_p + 2 * Cout_p * Cmid + 2 * NTAPS)))

    kernel = functools.partial(_cbatten_res_kernel, H=H, W=W, Cout=Cout, Bt=Bt)
    out_pad = pl.pallas_call(
        kernel,
        out_shape=jax.ShapeDtypeStruct((B, Cout_p, HW), f32),
        grid=(B // Bt,),
        in_specs=[
            pl.BlockSpec((Bt, Cin_p, HW), lambda i: (i, 0, 0)),            # x (batch-tiled slab)
            pl.BlockSpec((NTAPS, HW), lambda i: (0, 0)),                   # boundary masks
            pl.BlockSpec((2 * Cout_p, K), lambda i: (0, 0)),               # fused weight (bf16)
            pl.BlockSpec((2 * Cout_p, 1), lambda i: (0, 0)),               # fused bias
            pl.BlockSpec((Cout_p, Cmid), lambda i: (0, 0)),                # channel-attn W1^T
            pl.BlockSpec((Cout_p, Cmid), lambda i: (0, 0)),                # channel-attn W2
            pl.BlockSpec(memory_space=pltpu.MemorySpace.SMEM),             # spatial-attn weights
        ],
        out_specs=pl.BlockSpec((Bt, Cout_p, HW), lambda i: (i, 0, 0)),
        scratch_shapes=[pltpu.VMEM((K, Bt * HW), jnp.float32)],            # im2col + pooled slab
        compiler_params=pltpu.CompilerParams(
            dimension_semantics=("parallel",),
            vmem_limit_bytes=48 * 1024 * 1024),
        cost_estimate=pl.CostEstimate(flops=flops, transcendentals=transcendentals,
                                      bytes_accessed=bytes_accessed),
    )(x_pad, mask_arr, w_big, bias_big, wat, wb, wsa)

    return out_pad[:, :Cout, :].reshape(B, Cout, H, W)


def _reference(x, p):
    """Pure-JAX reference mirroring the PyTorch CBAtten_Res forward (eval-mode BN, f32 HIGHEST)."""
    dn = ("NCHW", "OIHW", "NCHW")
    hi = jax.lax.Precision.HIGHEST

    y = jax.lax.conv_general_dilated(x, p["conv1_w"], (1, 1), [(PAD, PAD), (PAD, PAD)],
                                     dimension_numbers=dn, precision=hi)
    y = y + p["conv1_b"][None, :, None, None]
    inv = p["bn_gamma"] / jnp.sqrt(p["bn_var"] + BN_EPS)
    y = (y - p["bn_mean"][None, :, None, None]) * inv[None, :, None, None] \
        + p["bn_beta"][None, :, None, None]
    y = jax.nn.relu(y)

    # ChannelAttention
    avg = jnp.mean(y, axis=(2, 3))
    mx = jnp.max(y, axis=(2, 3))

    def mlp(v):
        u = jax.nn.relu(jnp.einsum("bc,mc->bm", v, p["ca_w1"], precision=hi))
        return jnp.einsum("bm,cm->bc", u, p["ca_w2"], precision=hi)

    w_ca = jax.nn.sigmoid(mlp(avg) + mlp(mx))
    y = y * w_ca[:, :, None, None]

    # SpatialAttention (avg first, then max — matches torch.cat([avgout, maxout], dim=1))
    pooled = jnp.concatenate([jnp.mean(y, axis=1, keepdims=True),
                              jnp.max(y, axis=1, keepdims=True)], axis=1)
    sc = jax.lax.conv_general_dilated(pooled, p["sa_w"], (1, 1), [(PAD, PAD), (PAD, PAD)],
                                      dimension_numbers=dn, precision=hi)
    y = y * jax.nn.sigmoid(sc)

    # Residual: conv_res(max_pool(x)) with MaxPool2d(3, stride=1, padding=1)
    r = jax.lax.reduce_window(x, -jnp.inf, jax.lax.max, (1, 1, 3, 3), (1, 1, 1, 1),
                              [(0, 0), (0, 0), (PAD, PAD), (PAD, PAD)])
    r = jax.lax.conv_general_dilated(r, p["res_w"], (1, 1), [(0, 0), (0, 0)],
                                     dimension_numbers=dn, precision=hi)
    r = r + p["res_b"][None, :, None, None]
    return jax.nn.relu(y + r)


if __name__ == "__main__":
    key = jax.random.PRNGKey(0)
    ks = jax.random.split(key, 12)

    B, Cin, Cout, H, W = 2, 4, 8, 16, 16
    reduction = 2
    Cmid = Cout // reduction if Cout > reduction else 1   # ChannelAttention hidden width

    x = jax.random.normal(ks[0], (B, Cin, H, W), dtype=jnp.float32)
    params = {
        "conv1_w": 0.1 * jax.random.normal(ks[1], (Cout, Cin, KSIZE, KSIZE), jnp.float32),
        "conv1_b": 0.1 * jax.random.normal(ks[2], (Cout,), jnp.float32),
        "bn_gamma": 1.0 + 0.1 * jax.random.normal(ks[3], (Cout,), jnp.float32),
        "bn_beta": 0.1 * jax.random.normal(ks[4], (Cout,), jnp.float32),
        "bn_mean": 0.1 * jax.random.normal(ks[5], (Cout,), jnp.float32),
        "bn_var": 0.5 + jax.random.uniform(ks[6], (Cout,), jnp.float32),
        "ca_w1": 0.2 * jax.random.normal(ks[7], (Cmid, Cout), jnp.float32),
        "ca_w2": 0.2 * jax.random.normal(ks[8], (Cout, Cmid), jnp.float32),
        "sa_w": 0.2 * jax.random.normal(ks[9], (1, 2, KSIZE, KSIZE), jnp.float32),
        "res_w": 0.2 * jax.random.normal(ks[10], (Cout, Cin, 1, 1), jnp.float32),
        "res_b": 0.1 * jax.random.normal(ks[11], (Cout,), jnp.float32),
    }

    out = jax.block_until_ready(cbatten_res(x, params))
    ref = _reference(x, params)

    assert out.shape == (B, Cout, H, W) and out.dtype == jnp.float32
    max_err = float(jnp.max(jnp.abs(out - ref)))
    # bf16 MXU operands vs an f32 HIGHEST-precision reference -> tolerance is looser than before.
    assert jnp.allclose(out, ref, atol=5e-2, rtol=5e-2), f"max_err={max_err}"
    print("KERNEL_OK")
</pallas_src>

<mosaic_0001>
module attributes {stable_mosaic.version = 11 : i64} {
  func.func @_cbatten_res_kernel(%arg0: i32, %arg1: memref<2x8x256xf32, #tpu.memory_space<vmem>>, %arg2: memref<9x256xf32, #tpu.memory_space<vmem>>, %arg3: memref<16x80xbf16, #tpu.memory_space<vmem>>, %arg4: memref<16x1xf32, #tpu.memory_space<vmem>>, %arg5: memref<8x4xf32, #tpu.memory_space<vmem>>, %arg6: memref<8x4xf32, #tpu.memory_space<vmem>>, %arg7: memref<18xf32, #tpu.memory_space<smem>>, %arg8: memref<2x8x256xf32, #tpu.memory_space<vmem>>, %arg9: memref<80x512xf32, #tpu.memory_space<vmem>>) attributes {dimension_semantics = [#tpu.dimension_semantics<parallel>], iteration_bounds = array<i64: 1>, scalar_prefetch = 0 : i64, scratch_operands = 1 : i64, tpu.core_type = #tpu.core_type<tc>, window_params = [{transform_indices = @transform_0, window_bounds = array<i64: 2, 8, 256>}, {pipeline_mode = #tpu.pipeline_mode<synchronous>, transform_indices = @transform_1, window_bounds = array<i64: 9, 256>}, {pipeline_mode = #tpu.pipeline_mode<synchronous>, transform_indices = @transform_2, window_bounds = array<i64: 16, 80>}, {pipeline_mode = #tpu.pipeline_mode<synchronous>, transform_indices = @transform_3, window_bounds = array<i64: 16, 1>}, {pipeline_mode = #tpu.pipeline_mode<synchronous>, transform_indices = @transform_4, window_bounds = array<i64: 8, 4>}, {pipeline_mode = #tpu.pipeline_mode<synchronous>, transform_indices = @transform_5, window_bounds = array<i64: 8, 4>}, {transform_indices = @transform_6, window_bounds = array<i64: 18>}, {transform_indices = @transform_7, window_bounds = array<i64: 2, 8, 256>}]} {
    %c0 = arith.constant 0 : index
    %c0_0 = arith.constant 0 : index
    %0 = vector.load %arg2[%c0, %c0_0] : memref<9x256xf32, #tpu.memory_space<vmem>>, vector<1x256xf32>
    %c1 = arith.constant 1 : index
    %c0_1 = arith.constant 0 : index
    %1 = vector.load %arg2[%c1, %c0_1] : memref<9x256xf32, #tpu.memory_space<vmem>>, vector<1x256xf32>
    %c2 = arith.constant 2 : index
    %c0_2 = arith.constant 0 : index
    %2 = vector.load %arg2[%c2, %c0_2] : memref<9x256xf32, #tpu.memory_space<vmem>>, vector<1x256xf32>
    %c3 = arith.constant 3 : index
    %c0_3 = arith.constant 0 : index
    %3 = vector.load %arg2[%c3, %c0_3] : memref<9x256xf32, #tpu.memory_space<vmem>>, vector<1x256xf32>
    %c4 = arith.constant 4 : index
    %c0_4 = arith.constant 0 : index
    %4 = vector.load %arg2[%c4, %c0_4] : memref<9x256xf32, #tpu.memory_space<vmem>>, vector<1x256xf32>
    %c5 = arith.constant 5 : index
    %c0_5 = arith.constant 0 : index
    %5 = vector.load %arg2[%c5, %c0_5] : memref<9x256xf32, #tpu.memory_space<vmem>>, vector<1x256xf32>
    %c6 = arith.constant 6 : index
    %c0_6 = arith.constant 0 : index
    %6 = vector.load %arg2[%c6, %c0_6] : memref<9x256xf32, #tpu.memory_space<vmem>>, vector<1x256xf32>
    %c7 = arith.constant 7 : index
    %c0_7 = arith.constant 0 : index
    %7 = vector.load %arg2[%c7, %c0_7] : memref<9x256xf32, #tpu.memory_space<vmem>>, vector<1x256xf32>
    %c8 = arith.constant 8 : index
    %c0_8 = arith.constant 0 : index
    %8 = vector.load %arg2[%c8, %c0_8] : memref<9x256xf32, #tpu.memory_space<vmem>>, vector<1x256xf32>
    %c0_9 = arith.constant 0 : index
    %c0_10 = arith.constant 0 : index
    %c0_11 = arith.constant 0 : index
    %9 = vector.load %arg1[%c0_9, %c0_10, %c0_11] : memref<2x8x256xf32, #tpu.memory_space<vmem>>, vector<1x8x256xf32>
    %10 = vector.shape_cast %9 : vector<1x8x256xf32> to vector<8x256xf32>
    %c17_i32 = arith.constant 17 : i32
    %11 = tpu.dynamic_rotate %10 by %c17_i32 dim 1 : vector<8x256xf32>, i32 -> vector<8x256xf32>
    %12 = vector.broadcast %0 : vector<1x256xf32> to vector<8x256xf32>
    %13 = arith.mulf %11, %12 : vector<8x256xf32>
    %c0_12 = arith.constant 0 : index
    %c0_13 = arith.constant 0 : index
    %14 = vector.load %arg9[%c0_12, %c0_13] : memref<80x512xf32, #tpu.memory_space<vmem>>, vector<8x256xf32>
    tpu.vector_store %arg9[%c0_12, %c0_13], %13 {strides = array<i32>} : memref<80x512xf32, #tpu.memory_space<vmem>>, vector<8x256xf32>,
    %cst = arith.constant 5.000000e-01 : f32
    %15 = vector.broadcast %cst : f32 to vector<1x256xf32>
    %16 = arith.cmpf ogt, %0, %15 : vector<1x256xf32>
    %cst_14 = arith.constant 0xFF800000 : f32
    %17 = vector.shape_cast %16 : vector<1x256xi1> to vector<1x256xi1>
    %18 = vector.broadcast %17 : vector<1x256xi1> to vector<8x256xi1>
    %19 = vector.broadcast %cst_14 : f32 to vector<8x256xf32>
    %20 = arith.select %18, %11, %19 : vector<8x256xi1>, vector<8x256xf32>
    %21 = arith.maximumf %10, %20 : vector<8x256xf32>
    %c16_i32 = arith.constant 16 : i32
    %22 = tpu.dynamic_rotate %10 by %c16_i32 dim 1 : vector<8x256xf32>, i32 -> vector<8x256xf32>
    %23 = vector.broadcast %1 : vector<1x256xf32> to vector<8x256xf32>
    %24 = arith.mulf %22, %23 : vector<8x256xf32>
    %c8_15 = arith.constant 8 : index
    %c0_16 = arith.constant 0 : index
    %25 = vector.load %arg9[%c8_15, %c0_16] : memref<80x512xf32, #tpu.memory_space<vmem>>, vector<8x256xf32>
    tpu.vector_store %arg9[%c8_15, %c0_16], %24 {strides = array<i32>} : memref<80x512xf32, #tpu.memory_space<vmem>>, vector<8x256xf32>,
    %cst_17 = arith.constant 5.000000e-01 : f32
    %26 = vector.broadcast %cst_17 : f32 to vector<1x256xf32>
    %27 = arith.cmpf ogt, %1, %26 : vector<1x256xf32>
    %cst_18 = arith.constant 0xFF800000 : f32
    %28 = vector.shape_cast %27 : vector<1x256xi1> to vector<1x256xi1>
    %29 = vector.broadcast %28 : vector<1x256xi1> to vector<8x256xi1>
    %30 = vector.broadcast %cst_18 : f32 to vector<8x256xf32>
    %31 = arith.select %29, %22, %30 : vector<8x256xi1>, vector<8x256xf32>
    %32 = arith.maximumf %21, %31 : vector<8x256xf32>
    %c15_i32 = arith.constant 15 : i32
    %33 = tpu.dynamic_rotate %10 by %c15_i32 dim 1 : vector<8x256xf32>, i32 -> vector<8x256xf32>
    %34 = vector.broadcast %2 : vector<1x256xf32> to vector<8x256xf32>
    %35 = arith.mulf %33, %34 : vector<8x256xf32>
    %c16 = arith.constant 16 : index
    %c0_19 = arith.constant 0 : index
    %36 = vector.load %arg9[%c16, %c0_19] : memref<80x512xf32, #tpu.memory_space<vmem>>, vector<8x256xf32>
    tpu.vector_store %arg9[%c16, %c0_19], %35 {strides = array<i32>} : memref<80x512xf32, #tpu.memory_space<vmem>>, vector<8x256xf32>,
    %cst_20 = arith.constant 5.000000e-01 : f32
    %37 = vector.broadcast %cst_20 : f32 to vector<1x256xf32>
    %38 = arith.cmpf ogt, %2, %37 : vector<1x256xf32>
    %cst_21 = arith.constant 0xFF800000 : f32
    %39 = vector.shape_cast %38 : vector<1x256xi1> to vector<1x256xi1>
    %40 = vector.broadcast %39 : vector<1x256xi1> to vector<8x256xi1>
    %41 = vector.broadcast %cst_21 : f32 to vector<8x256xf32>
    %42 = arith.select %40, %33, %41 : vector<8x256xi1>, vector<8x256xf32>
    %43 = arith.maximumf %32, %42 : vector<8x256xf32>
    %c1_i32 = arith.constant 1 : i32
    %44 = tpu.dynamic_rotate %10 by %c1_i32 dim 1 : vector<8x256xf32>, i32 -> vector<8x256xf32>
    %45 = vector.broadcast %3 : vector<1x256xf32> to vector<8x256xf32>
    %46 = arith.mulf %44, %45 : vector<8x256xf32>
    %c24 = arith.constant 24 : index
    %c0_22 = arith.constant 0 : index
    %47 = vector.load %arg9[%c24, %c0_22] : memref<80x512xf32, #tpu.memory_space<vmem>>, vector<8x256xf32>
    tpu.vector_store %arg9[%c24, %c0_22], %46 {strides = array<i32>} : memref<80x512xf32, #tpu.memory_space<vmem>>, vector<8x256xf32>,
    %cst_23 = arith.constant 5.000000e-01 : f32
    %48 = vector.broadcast %cst_23 : f32 to vector<1x256xf32>
    %49 = arith.cmpf ogt, %3, %48 : vector<1x256xf32>
    %cst_24 = arith.constant 0xFF800000 : f32
    %50 = vector.shape_cast %49 : vector<1x256xi1> to vector<1x256xi1>
    %51 = vector.broadcast %50 : vector<1x256xi1> to vector<8x256xi1>
    %52 = vector.broadcast %cst_24 : f32 to vector<8x256xf32>
    %53 = arith.select %51, %44, %52 : vector<8x256xi1>, vector<8x256xf32>
    %54 = arith.maximumf %43, %53 : vector<8x256xf32>
    %55 = vector.broadcast %4 : vector<1x256xf32> to vector<8x256xf32>
    %56 = arith.mulf %10, %55 : vector<8x256xf32>
    %c32 = arith.constant 32 : index
    %c0_25 = arith.constant 0 : index
    %57 = vector.load %arg9[%c32, %c0_25] : memref<80x512xf32, #tpu.memory_space<vmem>>, vector<8x256xf32>
    tpu.vector_store %arg9[%c32, %c0_25], %56 {strides = array<i32>} : memref<80x512xf32, #tpu.memory_space<vmem>>, vector<8x256xf32>,
    %c255_i32 = arith.constant 255 : i32
    %58 = tpu.dynamic_rotate %10 by %c255_i32 dim 1 : vector<8x256xf32>, i32 -> vector<8x256xf32>
    %59 = vector.broadcast %5 : vector<1x256xf32> to vector<8x256xf32>
    %60 = arith.mulf %58, %59 : vector<8x256xf32>
    %c40 = arith.constant 40 : index
    %c0_26 = arith.constant 0 : index
    %61 = vector.load %arg9[%c40, %c0_26] : memref<80x512xf32, #tpu.memory_space<vmem>>, vector<8x256xf32>
    tpu.vector_store %arg9[%c40, %c0_26], %60 {strides = array<i32>} : memref<80x512xf32, #tpu.memory_space<vmem>>, vector<8x256xf32>,
    %cst_27 = arith.constant 5.000000e-01 : f32
    %62 = vector.broadcast %cst_27 : f32 to vector<1x256xf32>
    %63 = arith.cmpf ogt, %5, %62 : vector<1x256xf32>
    %cst_28 = arith.constant 0xFF800000 : f32
    %64 = vector.shape_cast %63 : vector<1x256xi1> to vector<1x256xi1>
    %65 = vector.broadcast %64 : vector<1x256xi1> to vector<8x256xi1>
    %66 = vector.broadcast %cst_28 : f32 to vector<8x256xf32>
    %67 = arith.select %65, %58, %66 : vector<8x256xi1>, vector<8x256xf32>
    %68 = arith.maximumf %54, %67 : vector<8x256xf32>
    %c241_i32 = arith.constant 241 : i32
    %69 = tpu.dynamic_rotate %10 by %c241_i32 dim 1 : vector<8x256xf32>, i32 -> vector<8x256xf32>
    %70 = vector.broadcast %6 : vector<1x256xf32> to vector<8x256xf32>
    %71 = arith.mulf %69, %70 : vector<8x256xf32>
    %c48 = arith.constant 48 : index
    %c0_29 = arith.constant 0 : index
    %72 = vector.load %arg9[%c48, %c0_29] : memref<80x512xf32, #tpu.memory_space<vmem>>, vector<8x256xf32>
    tpu.vector_store %arg9[%c48, %c0_29], %71 {strides = array<i32>} : memref<80x512xf32, #tpu.memory_space<vmem>>, vector<8x256xf32>,
    %cst_30 = arith.constant 5.000000e-01 : f32
    %73 = vector.broadcast %cst_30 : f32 to vector<1x256xf32>
    %74 = arith.cmpf ogt, %6, %73 : vector<1x256xf32>
    %cst_31 = arith.constant 0xFF800000 : f32
    %75 = vector.shape_cast %74 : vector<1x256xi1> to vector<1x256xi1>
    %76 = vector.broadcast %75 : vector<1x256xi1> to vector<8x256xi1>
    %77 = vector.broadcast %cst_31 : f32 to vector<8x256xf32>
    %78 = arith.select %76, %69, %77 : vector<8x256xi1>, vector<8x256xf32>
    %79 = arith.maximumf %68, %78 : vector<8x256xf32>
    %c240_i32 = arith.constant 240 : i32
    %80 = tpu.dynamic_rotate %10 by %c240_i32 dim 1 : vector<8x256xf32>, i32 -> vector<8x256xf32>
    %81 = vector.broadcast %7 : vector<1x256xf32> to vector<8x256xf32>
    %82 = arith.mulf %80, %81 : vector<8x256xf32>
    %c56 = arith.constant 56 : index
    %c0_32 = arith.constant 0 : index
    %83 = vector.load %arg9[%c56, %c0_32] : memref<80x512xf32, #tpu.memory_space<vmem>>, vector<8x256xf32>
    tpu.vector_store %arg9[%c56, %c0_32], %82 {strides = array<i32>} : memref<80x512xf32, #tpu.memory_space<vmem>>, vector<8x256xf32>,
    %cst_33 = arith.constant 5.000000e-01 : f32
    %84 = vector.broadcast %cst_33 : f32 to vector<1x256xf32>
    %85 = arith.cmpf ogt, %7, %84 : vector<1x256xf32>
    %cst_34 = arith.constant 0xFF800000 : f32
    %86 = vector.shape_cast %85 : vector<1x256xi1> to vector<1x256xi1>
    %87 = vector.broadcast %86 : vector<1x256xi1> to vector<8x256xi1>
    %88 = vector.broadcast %cst_34 : f32 to vector<8x256xf32>
    %89 = arith.select %87, %80, %88 : vector<8x256xi1>, vector<8x256xf32>
    %90 = arith.maximumf %79, %89 : vector<8x256xf32>
    %c239_i32 = arith.constant 239 : i32
    %91 = tpu.dynamic_rotate %10 by %c239_i32 dim 1 : vector<8x256xf32>, i32 -> vector<8x256xf32>
    %92 = vector.broadcast %8 : vector<1x256xf32> to vector<8x256xf32>
    %93 = arith.mulf %91, %92 : vector<8x256xf32>
    %c64 = arith.constant 64 : index
    %c0_35 = arith.constant 0 : index
    %94 = vector.load %arg9[%c64, %c0_35] : memref<80x512xf32, #tpu.memory_space<vmem>>, vector<8x256xf32>
    tpu.vector_store %arg9[%c64, %c0_35], %93 {strides = array<i32>} : memref<80x512xf32, #tpu.memory_space<vmem>>, vector<8x256xf32>,
    %cst_36 = arith.constant 5.000000e-01 : f32
    %95 = vector.broadcast %cst_36 : f32 to vector<1x256xf32>
    %96 = arith.cmpf ogt, %8, %95 : vector<1x256xf32>
    %cst_37 = arith.constant 0xFF800000 : f32
    %97 = vector.shape_cast %96 : vector<1x256xi1> to vector<1x256xi1>
    %98 = vector.broadcast %97 : vector<1x256xi1> to vector<8x256xi1>
    %99 = vector.broadcast %cst_37 : f32 to vector<8x256xf32>
    %100 = arith.select %98, %91, %99 : vector<8x256xi1>, vector<8x256xf32>
    %101 = arith.maximumf %90, %100 : vector<8x256xf32>
    %c72 = arith.constant 72 : index
    %c0_38 = arith.constant 0 : index
    %102 = vector.load %arg9[%c72, %c0_38] : memref<80x512xf32, #tpu.memory_space<vmem>>, vector<8x256xf32>
    tpu.vector_store %arg9[%c72, %c0_38], %101 {strides = array<i32>} : memref<80x512xf32, #tpu.memory_space<vmem>>, vector<8x256xf32>,
    %c1_39 = arith.constant 1 : index
    %c0_40 = arith.constant 0 : index
    %c0_41 = arith.constant 0 : index
    %103 = vector.load %arg1[%c1_39, %c0_40, %c0_41] : memref<2x8x256xf32, #tpu.memory_space<vmem>>, vector<1x8x256xf32>
    %104 = vector.shape_cast %103 : vector<1x8x256xf32> to vector<8x256xf32>
    %c17_i32_42 = arith.constant 17 : i32
    %105 = tpu.dynamic_rotate %104 by %c17_i32_42 dim 1 : vector<8x256xf32>, i32 -> vector<8x256xf32>
    %106 = vector.broadcast %0 : vector<1x256xf32> to vector<8x256xf32>
    %107 = arith.mulf %105, %106 : vector<8x256xf32>
    %c0_43 = arith.constant 0 : index
    %c256 = arith.constant 256 : index
    %108 = vector.load %arg9[%c0_43, %c256] : memref<80x512xf32, #tpu.memory_space<vmem>>, vector<8x256xf32>
    tpu.vector_store %arg9[%c0_43, %c256], %107 {strides = array<i32>} : memref<80x512xf32, #tpu.memory_space<vmem>>, vector<8x256xf32>,
    %cst_44 = arith.constant 5.000000e-01 : f32
    %109 = vector.broadcast %cst_44 : f32 to vector<1x256xf32>
    %110 = arith.cmpf ogt, %0, %109 : vector<1x256xf32>
    %cst_45 = arith.constant 0xFF800000 : f32
    %111 = vector.shape_cast %110 : vector<1x256xi1> to vector<1x256xi1>
    %112 = vector.broadcast %111 : vector<1x256xi1> to vector<8x256xi1>
    %113 = vector.broadcast %cst_45 : f32 to vector<8x256xf32>
    %114 = arith.select %112, %105, %113 : vector<8x256xi1>, vector<8x256xf32>
    %115 = arith.maximumf %104, %114 : vector<8x256xf32>
    %c16_i32_46 = arith.constant 16 : i32
    %116 = tpu.dynamic_rotate %104 by %c16_i32_46 dim 1 : vector<8x256xf32>, i32 -> vector<8x256xf32>
    %117 = vector.broadcast %1 : vector<1x256xf32> to vector<8x256xf32>
    %118 = arith.mulf %116, %117 : vector<8x256xf32>
    %c8_47 = arith.constant 8 : index
    %c256_48 = arith.constant 256 : index
    %119 = vector.load %arg9[%c8_47, %c256_48] : memref<80x512xf32, #tpu.memory_space<vmem>>, vector<8x256xf32>
    tpu.vector_store %arg9[%c8_47, %c256_48], %118 {strides = array<i32>} : memref<80x512xf32, #tpu.memory_space<vmem>>, vector<8x256xf32>,
    %cst_49 = arith.constant 5.000000e-01 : f32
    %120 = vector.broadcast %cst_49 : f32 to vector<1x256xf32>
    %121 = arith.cmpf ogt, %1, %120 : vector<1x256xf32>
    %cst_50 = arith.constant 0xFF800000 : f32
    %122 = vector.shape_cast %121 : vector<1x256xi1> to vector<1x256xi1>
    %123 = vector.broadcast %122 : vector<1x256xi1> to vector<8x256xi1>
    %124 = vector.broadcast %cst_50 : f32 to vector<8x256xf32>
    %125 = arith.select %123, %116, %124 : vector<8x256xi1>, vector<8x256xf32>
    %126 = arith.maximumf %115, %125 : vector<8x256xf32>
    %c15_i32_51 = arith.constant 15 : i32
    %127 = tpu.dynamic_rotate %104 by %c15_i32_51 dim 1 : vector<8x256xf32>, i32 -> vector<8x256xf32>
    %128 = vector.broadcast %2 : vector<1x256xf32> to vector<8x256xf32>
    %129 = arith.mulf %127, %128 : vector<8x256xf32>
    %c16_52 = arith.constant 16 : index
    %c256_53 = arith.constant 256 : index
    %130 = vector.load %arg9[%c16_52, %c256_53] : memref<80x512xf32, #tpu.memory_space<vmem>>, vector<8x256xf32>
    tpu.vector_store %arg9[%c16_52, %c256_53], %129 {strides = array<i32>} : memref<80x512xf32, #tpu.memory_space<vmem>>, vector<8x256xf32>,
    %cst_54 = arith.constant 5.000000e-01 : f32
    %131 = vector.broadcast %cst_54 : f32 to vector<1x256xf32>
    %132 = arith.cmpf ogt, %2, %131 : vector<1x256xf32>
    %cst_55 = arith.constant 0xFF800000 : f32
    %133 = vector.shape_cast %132 : vector<1x256xi1> to vector<1x256xi1>
    %134 = vector.broadcast %133 : vector<1x256xi1> to vector<8x256xi1>
    %135 = vector.broadcast %cst_55 : f32 to vector<8x256xf32>
    %136 = arith.select %134, %127, %135 : vector<8x256xi1>, vector<8x256xf32>
    %137 = arith.maximumf %126, %136 : vector<8x256xf32>
    %c1_i32_56 = arith.constant 1 : i32
    %138 = tpu.dynamic_rotate %104 by %c1_i32_56 dim 1 : vector<8x256xf32>, i32 -> vector<8x256xf32>
    %139 = vector.broadcast %3 : vector<1x256xf32> to vector<8x256xf32>
    %140 = arith.mulf %138, %139 : vector<8x256xf32>
    %c24_57 = arith.constant 24 : index
    %c256_58 = arith.constant 256 : index
    %141 = vector.load %arg9[%c24_57, %c256_58] : memref<80x512xf32, #tpu.memory_space<vmem>>, vector<8x256xf32>
    tpu.vector_store %arg9[%c24_57, %c256_58], %140 {strides = array<i32>} : memref<80x512xf32, #tpu.memory_space<vmem>>, vector<8x256xf32>,
    %cst_59 = arith.constant 5.000000e-01 : f32
    %142 = vector.broadcast %cst_59 : f32 to vector<1x256xf32>
    %143 = arith.cmpf ogt, %3, %142 : vector<1x256xf32>
    %cst_60 = arith.constant 0xFF800000 : f32
    %144 = vector.shape_cast %143 : vector<1x256xi1> to vector<1x256xi1>
    %145 = vector.broadcast %144 : vector<1x256xi1> to vector<8x256xi1>
    %146 = vector.broadcast %cst_60 : f32 to vector<8x256xf32>
    %147 = arith.select %145, %138, %146 : vector<8x256xi1>, vector<8x256xf32>
    %148 = arith.maximumf %137, %147 : vector<8x256xf32>
    %149 = vector.broadcast %4 : vector<1x256xf32> to vector<8x256xf32>
    %150 = arith.mulf %104, %149 : vector<8x256xf32>
    %c32_61 = arith.constant 32 : index
    %c256_62 = arith.constant 256 : index
    %151 = vector.load %arg9[%c32_61, %c256_62] : memref<80x512xf32, #tpu.memory_space<vmem>>, vector<8x256xf32>
    tpu.vector_store %arg9[%c32_61, %c256_62], %150 {strides = array<i32>} : memref<80x512xf32, #tpu.memory_space<vmem>>, vector<8x256xf32>,
    %c255_i32_63 = arith.constant 255 : i32
    %152 = tpu.dynamic_rotate %104 by %c255_i32_63 dim 1 : vector<8x256xf32>, i32 -> vector<8x256xf32>
    %153 = vector.broadcast %5 : vector<1x256xf32> to vector<8x256xf32>
    %154 = arith.mulf %152, %153 : vector<8x256xf32>
    %c40_64 = arith.constant 40 : index
    %c256_65 = arith.constant 256 : index
    %155 = vector.load %arg9[%c40_64, %c256_65] : memref<80x512xf32, #tpu.memory_space<vmem>>, vector<8x256xf32>
    tpu.vector_store %arg9[%c40_64, %c256_65], %154 {strides = array<i32>} : memref<80x512xf32, #tpu.memory_space<vmem>>, vector<8x256xf32>,
    %cst_66 = arith.constant 5.000000e-01 : f32
    %156 = vector.broadcast %cst_66 : f32 to vector<1x256xf32>
    %157 = arith.cmpf ogt, %5, %156 : vector<1x256xf32>
    %cst_67 = arith.constant 0xFF800000 : f32
    %158 = vector.shape_cast %157 : vector<1x256xi1> to vector<1x256xi1>
    %159 = vector.broadcast %158 : vector<1x256xi1> to vector<8x256xi1>
    %160 = vector.broadcast %cst_67 : f32 to vector<8x256xf32>
    %161 = arith.select %159, %152, %160 : vector<8x256xi1>, vector<8x256xf32>
    %162 = arith.maximumf %148, %161 : vector<8x256xf32>
    %c241_i32_68 = arith.constant 241 : i32
    %163 = tpu.dynamic_rotate %104 by %c241_i32_68 dim 1 : vector<8x256xf32>, i32 -> vector<8x256xf32>
    %164 = vector.broadcast %6 : vector<1x256xf32> to vector<8x256xf32>
    %165 = arith.mulf %163, %164 : vector<8x256xf32>
    %c48_69 = arith.constant 48 : index
    %c256_70 = arith.constant 256 : index
    %166 = vector.load %arg9[%c48_69, %c256_70] : memref<80x512xf32, #tpu.memory_space<vmem>>, vector<8x256xf32>
    tpu.vector_store %arg9[%c48_69, %c256_70], %165 {strides = array<i32>} : memref<80x512xf32, #tpu.memory_space<vmem>>, vector<8x256xf32>,
    %cst_71 = arith.constant 5.000000e-01 : f32
    %167 = vector.broadcast %cst_71 : f32 to vector<1x256xf32>
    %168 = arith.cmpf ogt, %6, %167 : vector<1x256xf32>
    %cst_72 = arith.constant 0xFF800000 : f32
    %169 = vector.shape_cast %168 : vector<1x256xi1> to vector<1x256xi1>
    %170 = vector.broadcast %169 : vector<1x256xi1> to vector<8x256xi1>
    %171 = vector.broadcast %cst_72 : f32 to vector<8x256xf32>
    %172 = arith.select %170, %163, %171 : vector<8x256xi1>, vector<8x256xf32>
    %173 = arith.maximumf %162, %172 : vector<8x256xf32>
    %c240_i32_73 = arith.constant 240 : i32
    %174 = tpu.dynamic_rotate %104 by %c240_i32_73 dim 1 : vector<8x256xf32>, i32 -> vector<8x256xf32>
    %175 = vector.broadcast %7 : vector<1x256xf32> to vector<8x256xf32>
    %176 = arith.mulf %174, %175 : vector<8x256xf32>
    %c56_74 = arith.constant 56 : index
    %c256_75 = arith.constant 256 : index
    %177 = vector.load %arg9[%c56_74, %c256_75] : memref<80x512xf32, #tpu.memory_space<vmem>>, vector<8x256xf32>
    tpu.vector_store %arg9[%c56_74, %c256_75], %176 {strides = array<i32>} : memref<80x512xf32, #tpu.memory_space<vmem>>, vector<8x256xf32>,
    %cst_76 = arith.constant 5.000000e-01 : f32
    %178 = vector.broadcast %cst_76 : f32 to vector<1x256xf32>
    %179 = arith.cmpf ogt, %7, %178 : vector<1x256xf32>
    %cst_77 = arith.constant 0xFF800000 : f32
    %180 = vector.shape_cast %179 : vector<1x256xi1> to vector<1x256xi1>
    %181 = vector.broadcast %180 : vector<1x256xi1> to vector<8x256xi1>
    %182 = vector.broadcast %cst_77 : f32 to vector<8x256xf32>
    %183 = arith.select %181, %174, %182 : vector<8x256xi1>, vector<8x256xf32>
    %184 = arith.maximumf %173, %183 : vector<8x256xf32>
    %c239_i32_78 = arith.constant 239 : i32
    %185 = tpu.dynamic_rotate %104 by %c239_i32_78 dim 1 : vector<8x256xf32>, i32 -> vector<8x256xf32>
    %186 = vector.broadcast %8 : vector<1x256xf32> to vector<8x256xf32>
    %187 = arith.mulf %185, %186 : vector<8x256xf32>
    %c64_79 = arith.constant 64 : index
    %c256_80 = arith.constant 256 : index
    %188 = vector.load %arg9[%c64_79, %c256_80] : memref<80x512xf32, #tpu.memory_space<vmem>>, vector<8x256xf32>
    tpu.vector_store %arg9[%c64_79, %c256_80], %187 {strides = array<i32>} : memref<80x512xf32, #tpu.memory_space<vmem>>, vector<8x256xf32>,
    %cst_81 = arith.constant 5.000000e-01 : f32
    %189 = vector.broadcast %cst_81 : f32 to vector<1x256xf32>
    %190 = arith.cmpf ogt, %8, %189 : vector<1x256xf32>
    %cst_82 = arith.constant 0xFF800000 : f32
    %191 = vector.shape_cast %190 : vector<1x256xi1> to vector<1x256xi1>
    %192 = vector.broadcast %191 : vector<1x256xi1> to vector<8x256xi1>
    %193 = vector.broadcast %cst_82 : f32 to vector<8x256xf32>
    %194 = arith.select %192, %185, %193 : vector<8x256xi1>, vector<8x256xf32>
    %195 = arith.maximumf %184, %194 : vector<8x256xf32>
    %c72_83 = arith.constant 72 : index
    %c256_84 = arith.constant 256 : index
    %196 = vector.load %arg9[%c72_83, %c256_84] : memref<80x512xf32, #tpu.memory_space<vmem>>, vector<8x256xf32>
    tpu.vector_store %arg9[%c72_83, %c256_84], %195 {strides = array<i32>} : memref<80x512xf32, #tpu.memory_space<vmem>>, vector<8x256xf32>,
    %c0_85 = arith.constant 0 : index
    %c0_86 = arith.constant 0 : index
    %197 = vector.load %arg3[%c0_85, %c0_86] : memref<16x80xbf16, #tpu.memory_space<vmem>>, vector<16x80xbf16>
    %c0_87 = arith.constant 0 : index
    %c0_88 = arith.constant 0 : index
    %198 = vector.load %arg9[%c0_87, %c0_88] : memref<80x512xf32, #tpu.memory_space<vmem>>, vector<80x512xf32>
    %199 = arith.truncf %198 : vector<80x512xf32> to vector<80x512xbf16>
    %cst_89 = arith.constant dense<0.000000e+00> : vector<16x512xf32>
    %200 = tpu.matmul %197, %199, %cst_89 {dimension_numbers = #tpu.dot_dimension_numbers<[1], [0], [0], [1], [0, 0, 1, 1], [], []>} : vector<16x80xbf16>, vector<80x512xbf16>, vector<16x512xf32> -> vector<16x512xf32>
    %c0_90 = arith.constant 0 : index
    %c0_91 = arith.constant 0 : index
    %201 = vector.load %arg4[%c0_90, %c0_91] : memref<16x1xf32, #tpu.memory_space<vmem>>, vector<16x1xf32>
    %202 = vector.broadcast %201 : vector<16x1xf32> to vector<16x512xf32>
    %203 = arith.addf %200, %202 : vector<16x512xf32>
    %c0_92 = arith.constant 0 : index
    %c0_93 = arith.constant 0 : index
    %204 = vector.load %arg5[%c0_92, %c0_93] : memref<8x4xf32, #tpu.memory_space<vmem>>, vector<8x4xf32>
    %c0_94 = arith.constant 0 : index
    %c0_95 = arith.constant 0 : index
    %205 = vector.load %arg6[%c0_94, %c0_95] : memref<8x4xf32, #tpu.memory_space<vmem>>, vector<8x4xf32>
    %206 = vector.extract_strided_slice %203 {offsets = [0, 0], sizes = [8, 256], strides = [1, 1]} : vector<16x512xf32> to vector<8x256xf32>
    %cst_96 = arith.constant 0.000000e+00 : f32
    %207 = vector.broadcast %cst_96 : f32 to vector<8x256xf32>
    %208 = arith.maximumf %206, %207 : vector<8x256xf32>
    %209 = vector.extract_strided_slice %203 {offsets = [8, 0], sizes = [8, 256], strides = [1, 1]} : vector<16x512xf32> to vector<8x256xf32>
    %cst_97 = arith.constant dense<0.000000e+00> : vector<8xf32>
    %210 = vector.multi_reduction <add>, %208, %cst_97 [1] : vector<8x256xf32> to vector<8xf32>
    %211 = vector.shape_cast %210 : vector<8xf32> to vector<8x1xf32>
    %cst_98 = arith.constant 2.560000e+02 : f32
    %212 = vector.broadcast %cst_98 : f32 to vector<8x1xf32>
    %213 = arith.divf %211, %212 : vector<8x1xf32>
    %cst_99 = arith.constant dense<0xFF800000> : vector<8xf32>
    %214 = vector.multi_reduction <maximumf>, %208, %cst_99 [1] : vector<8x256xf32> to vector<8xf32>
    %215 = vector.shape_cast %214 : vector<8xf32> to vector<8x1xf32>
    %216 = vector.broadcast %213 : vector<8x1xf32> to vector<8x4xf32>
    %217 = arith.mulf %204, %216 : vector<8x4xf32>
    %cst_100 = arith.constant dense<0.000000e+00> : vector<4xf32>
    %218 = vector.multi_reduction <add>, %217, %cst_100 [0] : vector<8x4xf32> to vector<4xf32>
    %219 = vector.shape_cast %218 : vector<4xf32> to vector<1x4xf32>
    %cst_101 = arith.constant 0.000000e+00 : f32
    %220 = vector.broadcast %cst_101 : f32 to vector<1x4xf32>
    %221 = arith.maximumf %219, %220 : vector<1x4xf32>
    %222 = vector.broadcast %221 : vector<1x4xf32> to vector<8x4xf32>
    %223 = arith.mulf %205, %222 : vector<8x4xf32>
    %cst_102 = arith.constant dense<0.000000e+00> : vector<8xf32>
    %224 = vector.multi_reduction <add>, %223, %cst_102 [1] : vector<8x4xf32> to vector<8xf32>
    %225 = vector.shape_cast %224 : vector<8xf32> to vector<8x1xf32>
    %226 = vector.broadcast %215 : vector<8x1xf32> to vector<8x4xf32>
    %227 = arith.mulf %204, %226 : vector<8x4xf32>
    %cst_103 = arith.constant dense<0.000000e+00> : vector<4xf32>
    %228 = vector.multi_reduction <add>, %227, %cst_103 [0] : vector<8x4xf32> to vector<4xf32>
    %229 = vector.shape_cast %228 : vector<4xf32> to vector<1x4xf32>
    %cst_104 = arith.constant 0.000000e+00 : f32
    %230 = vector.broadcast %cst_104 : f32 to vector<1x4xf32>
    %231 = arith.maximumf %229, %230 : vector<1x4xf32>
    %232 = vector.broadcast %231 : vector<1x4xf32> to vector<8x4xf32>
    %233 = arith.mulf %205, %232 : vector<8x4xf32>
    %cst_105 = arith.constant dense<0.000000e+00> : vector<8xf32>
    %234 = vector.multi_reduction <add>, %233, %cst_105 [1] : vector<8x4xf32> to vector<8xf32>
    %235 = vector.shape_cast %234 : vector<8xf32> to vector<8x1xf32>
    %236 = arith.addf %225, %235 : vector<8x1xf32>
    %237 = arith.negf %236 : vector<8x1xf32>
    %238 = math.exp %237 : vector<8x1xf32>
    %cst_106 = arith.constant 1.000000e+00 : f32
    %239 = vector.broadcast %cst_106 : f32 to vector<8x1xf32>
    %240 = arith.addf %239, %238 : vector<8x1xf32>
    %241 = arith.divf %239, %240 : vector<8x1xf32>
    %242 = vector.broadcast %241 : vector<8x1xf32> to vector<8x256xf32>
    %243 = arith.mulf %208, %242 : vector<8x256xf32>
    %cst_107 = arith.constant dense<0.000000e+00> : vector<256xf32>
    %244 = vector.multi_reduction <add>, %243, %cst_107 [0] : vector<8x256xf32> to vector<256xf32>
    %245 = vector.shape_cast %244 : vector<256xf32> to vector<1x256xf32>
    %cst_108 = arith.constant 1.250000e-01 : f32
    %246 = vector.broadcast %cst_108 : f32 to vector<1x256xf32>
    %247 = arith.mulf %245, %246 : vector<1x256xf32>
    %cst_109 = arith.constant dense<0xFF800000> : vector<256xf32>
    %248 = vector.multi_reduction <maximumf>, %243, %cst_109 [0] : vector<8x256xf32> to vector<256xf32>
    %249 = vector.shape_cast %248 : vector<256xf32> to vector<1x256xf32>
    %cst_110 = arith.constant 0.000000e+00 : f32
    %250 = vector.broadcast %cst_110 : f32 to vector<1x256xf32>
    %cst_111 = arith.constant 0.000000e+00 : f32
    %251 = vector.broadcast %cst_111 : f32 to vector<1x256xf32>
    %c0_112 = arith.constant 0 : index
    %252 = memref.load %arg7[%c0_112] : memref<18xf32, #tpu.memory_space<smem>>
    %253 = vector.broadcast %252 : f32 to vector<1x256xf32>
    %254 = arith.mulf %253, %247 : vector<1x256xf32>
    %c1_113 = arith.constant 1 : index
    %255 = memref.load %arg7[%c1_113] : memref<18xf32, #tpu.memory_space<smem>>
    %256 = vector.broadcast %255 : f32 to vector<1x256xf32>
    %257 = arith.mulf %256, %249 : vector<1x256xf32>
    %258 = arith.addf %254, %257 : vector<1x256xf32>
    %c17_i32_114 = arith.constant 17 : i32
    %259 = tpu.dynamic_rotate %258 by %c17_i32_114 dim 1 : vector<1x256xf32>, i32 -> vector<1x256xf32>
    %260 = arith.mulf %259, %0 : vector<1x256xf32>
    %261 = arith.addf %250, %260 : vector<1x256xf32>
    %c2_115 = arith.constant 2 : index
    %262 = memref.load %arg7[%c2_115] : memref<18xf32, #tpu.memory_space<smem>>
    %263 = vector.broadcast %262 : f32 to vector<1x256xf32>
    %264 = arith.mulf %263, %247 : vector<1x256xf32>
    %c3_116 = arith.constant 3 : index
    %265 = memref.load %arg7[%c3_116] : memref<18xf32, #tpu.memory_space<smem>>
    %266 = vector.broadcast %265 : f32 to vector<1x256xf32>
    %267 = arith.mulf %266, %249 : vector<1x256xf32>
    %268 = arith.addf %264, %267 : vector<1x256xf32>
    %c16_i32_117 = arith.constant 16 : i32
    %269 = tpu.dynamic_rotate %268 by %c16_i32_117 dim 1 : vector<1x256xf32>, i32 -> vector<1x256xf32>
    %270 = arith.mulf %269, %1 : vector<1x256xf32>
    %271 = arith.addf %251, %270 : vector<1x256xf32>
    %c4_118 = arith.constant 4 : index
    %272 = memref.load %arg7[%c4_118] : memref<18xf32, #tpu.memory_space<smem>>
    %273 = vector.broadcast %272 : f32 to vector<1x256xf32>
    %274 = arith.mulf %273, %247 : vector<1x256xf32>
    %c5_119 = arith.constant 5 : index
    %275 = memref.load %arg7[%c5_119] : memref<18xf32, #tpu.memory_space<smem>>
    %276 = vector.broadcast %275 : f32 to vector<1x256xf32>
    %277 = arith.mulf %276, %249 : vector<1x256xf32>
    %278 = arith.addf %274, %277 : vector<1x256xf32>
    %c15_i32_120 = arith.constant 15 : i32
    %279 = tpu.dynamic_rotate %278 by %c15_i32_120 dim 1 : vector<1x256xf32>, i32 -> vector<1x256xf32>
    %280 = arith.mulf %279, %2 : vector<1x256xf32>
    %281 = arith.addf %261, %280 : vector<1x256xf32>
    %c6_121 = arith.constant 6 : index
    %282 = memref.load %arg7[%c6_121] : memref<18xf32, #tpu.memory_space<smem>>
    %283 = vector.broadcast %282 : f32 to vector<1x256xf32>
    %284 = arith.mulf %283, %247 : vector<1x256xf32>
    %c7_122 = arith.constant 7 : index
    %285 = memref.load %arg7[%c7_122] : memref<18xf32, #tpu.memory_space<smem>>
    %286 = vector.broadcast %285 : f32 to vector<1x256xf32>
    %287 = arith.mulf %286, %249 : vector<1x256xf32>
    %288 = arith.addf %284, %287 : vector<1x256xf32>
    %c1_i32_123 = arith.constant 1 : i32
    %289 = tpu.dynamic_rotate %288 by %c1_i32_123 dim 1 : vector<1x256xf32>, i32 -> vector<1x256xf32>
    %290 = arith.mulf %289, %3 : vector<1x256xf32>
    %291 = arith.addf %271, %290 : vector<1x256xf32>
    %c8_124 = arith.constant 8 : index
    %292 = memref.load %arg7[%c8_124] : memref<18xf32, #tpu.memory_space<smem>>
    %293 = vector.broadcast %292 : f32 to vector<1x256xf32>
    %294 = arith.mulf %293, %247 : vector<1x256xf32>
    %c9 = arith.constant 9 : index
    %295 = memref.load %arg7[%c9] : memref<18xf32, #tpu.memory_space<smem>>
    %296 = vector.broadcast %295 : f32 to vector<1x256xf32>
    %297 = arith.mulf %296, %249 : vector<1x256xf32>
    %298 = arith.addf %294, %297 : vector<1x256xf32>
    %299 = arith.mulf %298, %4 : vector<1x256xf32>
    %300 = arith.addf %281, %299 : vector<1x256xf32>
    %c10 = arith.constant 10 : index
    %301 = memref.load %arg7[%c10] : memref<18xf32, #tpu.memory_space<smem>>
    %302 = vector.broadcast %301 : f32 to vector<1x256xf32>
    %303 = arith.mulf %302, %247 : vector<1x256xf32>
    %c11 = arith.constant 11 : index
    %304 = memref.load %arg7[%c11] : memref<18xf32, #tpu.memory_space<smem>>
    %305 = vector.broadcast %304 : f32 to vector<1x256xf32>
    %306 = arith.mulf %305, %249 : vector<1x256xf32>
    %307 = arith.addf %303, %306 : vector<1x256xf32>
    %c255_i32_125 = arith.constant 255 : i32
    %308 = tpu.dynamic_rotate %307 by %c255_i32_125 dim 1 : vector<1x256xf32>, i32 -> vector<1x256xf32>
    %309 = arith.mulf %308, %5 : vector<1x256xf32>
    %310 = arith.addf %291, %309 : vector<1x256xf32>
    %c12 = arith.constant 12 : index
    %311 = memref.load %arg7[%c12] : memref<18xf32, #tpu.memory_space<smem>>
    %312 = vector.broadcast %311 : f32 to vector<1x256xf32>
    %313 = arith.mulf %312, %247 : vector<1x256xf32>
    %c13 = arith.constant 13 : index
    %314 = memref.load %arg7[%c13] : memref<18xf32, #tpu.memory_space<smem>>
    %315 = vector.broadcast %314 : f32 to vector<1x256xf32>
    %316 = arith.mulf %315, %249 : vector<1x256xf32>
    %317 = arith.addf %313, %316 : vector<1x256xf32>
    %c241_i32_126 = arith.constant 241 : i32
    %318 = tpu.dynamic_rotate %317 by %c241_i32_126 dim 1 : vector<1x256xf32>, i32 -> vector<1x256xf32>
    %319 = arith.mulf %318, %6 : vector<1x256xf32>
    %320 = arith.addf %300, %319 : vector<1x256xf32>
    %c14 = arith.constant 14 : index
    %321 = memref.load %arg7[%c14] : memref<18xf32, #tpu.memory_space<smem>>
    %322 = vector.broadcast %321 : f32 to vector<1x256xf32>
    %323 = arith.mulf %322, %247 : vector<1x256xf32>
    %c15 = arith.constant 15 : index
    %324 = memref.load %arg7[%c15] : memref<18xf32, #tpu.memory_space<smem>>
    %325 = vector.broadcast %324 : f32 to vector<1x256xf32>
    %326 = arith.mulf %325, %249 : vector<1x256xf32>
    %327 = arith.addf %323, %326 : vector<1x256xf32>
    %c240_i32_127 = arith.constant 240 : i32
    %328 = tpu.dynamic_rotate %327 by %c240_i32_127 dim 1 : vector<1x256xf32>, i32 -> vector<1x256xf32>
    %329 = arith.mulf %328, %7 : vector<1x256xf32>
    %330 = arith.addf %310, %329 : vector<1x256xf32>
    %c16_128 = arith.constant 16 : index
    %331 = memref.load %arg7[%c16_128] : memref<18xf32, #tpu.memory_space<smem>>
    %332 = vector.broadcast %331 : f32 to vector<1x256xf32>
    %333 = arith.mulf %332, %247 : vector<1x256xf32>
    %c17 = arith.constant 17 : index
    %334 = memref.load %arg7[%c17] : memref<18xf32, #tpu.memory_space<smem>>
    %335 = vector.broadcast %334 : f32 to vector<1x256xf32>
    %336 = arith.mulf %335, %249 : vector<1x256xf32>
    %337 = arith.addf %333, %336 : vector<1x256xf32>
    %c239_i32_129 = arith.constant 239 : i32
    %338 = tpu.dynamic_rotate %337 by %c239_i32_129 dim 1 : vector<1x256xf32>, i32 -> vector<1x256xf32>
    %339 = arith.mulf %338, %8 : vector<1x256xf32>
    %340 = arith.addf %320, %339 : vector<1x256xf32>
    %341 = arith.addf %340, %330 : vector<1x256xf32>
    %342 = arith.negf %341 : vector<1x256xf32>
    %343 = math.exp %342 : vector<1x256xf32>
    %cst_130 = arith.constant 1.000000e+00 : f32
    %344 = vector.broadcast %cst_130 : f32 to vector<1x256xf32>
    %345 = arith.addf %344, %343 : vector<1x256xf32>
    %346 = arith.divf %344, %345 : vector<1x256xf32>
    %347 = vector.broadcast %346 : vector<1x256xf32> to vector<8x256xf32>
    %348 = arith.mulf %243, %347 : vector<8x256xf32>
    %349 = arith.addf %348, %209 : vector<8x256xf32>
    %cst_131 = arith.constant 0.000000e+00 : f32
    %350 = vector.broadcast %cst_131 : f32 to vector<8x256xf32>
    %351 = arith.maximumf %349, %350 : vector<8x256xf32>
    %c0_132 = arith.constant 0 : index
    %c0_133 = arith.constant 0 : index
    %c0_134 = arith.constant 0 : index
    %352 = vector.load %arg8[%c0_132, %c0_133, %c0_134] : memref<2x8x256xf32, #tpu.memory_space<vmem>>, vector<1x8x256xf32>
    %353 = vector.shape_cast %352 : vector<1x8x256xf32> to vector<8x256xf32>
    %354 = vector.shape_cast %351 : vector<8x256xf32> to vector<1x8x256xf32>
    tpu.vector_store %arg8[%c0_132, %c0_133, %c0_134], %354 {strides = array<i32>} : memref<2x8x256xf32, #tpu.memory_space<vmem>>, vector<1x8x256xf32>,
    %355 = vector.extract_strided_slice %203 {offsets = [0, 256], sizes = [8, 256], strides = [1, 1]} : vector<16x512xf32> to vector<8x256xf32>
    %cst_135 = arith.constant 0.000000e+00 : f32
    %356 = vector.broadcast %cst_135 : f32 to vector<8x256xf32>
    %357 = arith.maximumf %355, %356 : vector<8x256xf32>
    %358 = vector.extract_strided_slice %203 {offsets = [8, 256], sizes = [8, 256], strides = [1, 1]} : vector<16x512xf32> to vector<8x256xf32>
    %cst_136 = arith.constant dense<0.000000e+00> : vector<8xf32>
    %359 = vector.multi_reduction <add>, %357, %cst_136 [1] : vector<8x256xf32> to vector<8xf32>
    %360 = vector.shape_cast %359 : vector<8xf32> to vector<8x1xf32>
    %cst_137 = arith.constant 2.560000e+02 : f32
    %361 = vector.broadcast %cst_137 : f32 to vector<8x1xf32>
    %362 = arith.divf %360, %361 : vector<8x1xf32>
    %cst_138 = arith.constant dense<0xFF800000> : vector<8xf32>
    %363 = vector.multi_reduction <maximumf>, %357, %cst_138 [1] : vector<8x256xf32> to vector<8xf32>
    %364 = vector.shape_cast %363 : vector<8xf32> to vector<8x1xf32>
    %365 = vector.broadcast %362 : vector<8x1xf32> to vector<8x4xf32>
    %366 = arith.mulf %204, %365 : vector<8x4xf32>
    %cst_139 = arith.constant dense<0.000000e+00> : vector<4xf32>
    %367 = vector.multi_reduction <add>, %366, %cst_139 [0] : vector<8x4xf32> to vector<4xf32>
    %368 = vector.shape_cast %367 : vector<4xf32> to vector<1x4xf32>
    %cst_140 = arith.constant 0.000000e+00 : f32
    %369 = vector.broadcast %cst_140 : f32 to vector<1x4xf32>
    %370 = arith.maximumf %368, %369 : vector<1x4xf32>
    %371 = vector.broadcast %370 : vector<1x4xf32> to vector<8x4xf32>
    %372 = arith.mulf %205, %371 : vector<8x4xf32>
    %cst_141 = arith.constant dense<0.000000e+00> : vector<8xf32>
    %373 = vector.multi_reduction <add>, %372, %cst_141 [1] : vector<8x4xf32> to vector<8xf32>
    %374 = vector.shape_cast %373 : vector<8xf32> to vector<8x1xf32>
    %375 = vector.broadcast %364 : vector<8x1xf32> to vector<8x4xf32>
    %376 = arith.mulf %204, %375 : vector<8x4xf32>
    %cst_142 = arith.constant dense<0.000000e+00> : vector<4xf32>
    %377 = vector.multi_reduction <add>, %376, %cst_142 [0] : vector<8x4xf32> to vector<4xf32>
    %378 = vector.shape_cast %377 : vector<4xf32> to vector<1x4xf32>
    %cst_143 = arith.constant 0.000000e+00 : f32
    %379 = vector.broadcast %cst_143 : f32 to vector<1x4xf32>
    %380 = arith.maximumf %378, %379 : vector<1x4xf32>
    %381 = vector.broadcast %380 : vector<1x4xf32> to vector<8x4xf32>
    %382 = arith.mulf %205, %381 : vector<8x4xf32>
    %cst_144 = arith.constant dense<0.000000e+00> : vector<8xf32>
    %383 = vector.multi_reduction <add>, %382, %cst_144 [1] : vector<8x4xf32> to vector<8xf32>
    %384 = vector.shape_cast %383 : vector<8xf32> to vector<8x1xf32>
    %385 = arith.addf %374, %384 : vector<8x1xf32>
    %386 = arith.negf %385 : vector<8x1xf32>
    %387 = math.exp %386 : vector<8x1xf32>
    %cst_145 = arith.constant 1.000000e+00 : f32
    %388 = vector.broadcast %cst_145 : f32 to vector<8x1xf32>
    %389 = arith.addf %388, %387 : vector<8x1xf32>
    %390 = arith.divf %388, %389 : vector<8x1xf32>
    %391 = vector.broadcast %390 : vector<8x1xf32> to vector<8x256xf32>
    %392 = arith.mulf %357, %391 : vector<8x256xf32>
    %cst_146 = arith.constant dense<0.000000e+00> : vector<256xf32>
    %393 = vector.multi_reduction <add>, %392, %cst_146 [0] : vector<8x256xf32> to vector<256xf32>
    %394 = vector.shape_cast %393 : vector<256xf32> to vector<1x256xf32>
    %cst_147 = arith.constant 1.250000e-01 : f32
    %395 = vector.broadcast %cst_147 : f32 to vector<1x256xf32>
    %396 = arith.mulf %394, %395 : vector<1x256xf32>
    %cst_148 = arith.constant dense<0xFF800000> : vector<256xf32>
    %397 = vector.multi_reduction <maximumf>, %392, %cst_148 [0] : vector<8x256xf32> to vector<256xf32>
    %398 = vector.shape_cast %397 : vector<256xf32> to vector<1x256xf32>
    %cst_149 = arith.constant 0.000000e+00 : f32
    %399 = vector.broadcast %cst_149 : f32 to vector<1x256xf32>
    %cst_150 = arith.constant 0.000000e+00 : f32
    %400 = vector.broadcast %cst_150 : f32 to vector<1x256xf32>
    %c0_151 = arith.constant 0 : index
    %401 = memref.load %arg7[%c0_151] : memref<18xf32, #tpu.memory_space<smem>>
    %402 = vector.broadcast %401 : f32 to vector<1x256xf32>
    %403 = arith.mulf %402, %396 : vector<1x256xf32>
    %c1_152 = arith.constant 1 : index
    %404 = memref.load %arg7[%c1_152] : memref<18xf32, #tpu.memory_space<smem>>
    %405 = vector.broadcast %404 : f32 to vector<1x256xf32>
    %406 = arith.mulf %405, %398 : vector<1x256xf32>
    %407 = arith.addf %403, %406 : vector<1x256xf32>
    %c17_i32_153 = arith.constant 17 : i32
    %408 = tpu.dynamic_rotate %407 by %c17_i32_153 dim 1 : vector<1x256xf32>, i32 -> vector<1x256xf32>
    %409 = arith.mulf %408, %0 : vector<1x256xf32>
    %410 = arith.addf %399, %409 : vector<1x256xf32>
    %c2_154 = arith.constant 2 : index
    %411 = memref.load %arg7[%c2_154] : memref<18xf32, #tpu.memory_space<smem>>
    %412 = vector.broadcast %411 : f32 to vector<1x256xf32>
    %413 = arith.mulf %412, %396 : vector<1x256xf32>
    %c3_155 = arith.constant 3 : index
    %414 = memref.load %arg7[%c3_155] : memref<18xf32, #tpu.memory_space<smem>>
    %415 = vector.broadcast %414 : f32 to vector<1x256xf32>
    %416 = arith.mulf %415, %398 : vector<1x256xf32>
    %417 = arith.addf %413, %416 : vector<1x256xf32>
    %c16_i32_156 = arith.constant 16 : i32
    %418 = tpu.dynamic_rotate %417 by %c16_i32_156 dim 1 : vector<1x256xf32>, i32 -> vector<1x256xf32>
    %419 = arith.mulf %418, %1 : vector<1x256xf32>
    %420 = arith.addf %400, %419 : vector<1x256xf32>
    %c4_157 = arith.constant 4 : index
    %421 = memref.load %arg7[%c4_157] : memref<18xf32, #tpu.memory_space<smem>>
    %422 = vector.broadcast %421 : f32 to vector<1x256xf32>
    %423 = arith.mulf %422, %396 : vector<1x256xf32>
    %c5_158 = arith.constant 5 : index
    %424 = memref.load %arg7[%c5_158] : memref<18xf32, #tpu.memory_space<smem>>
    %425 = vector.broadcast %424 : f32 to vector<1x256xf32>
    %426 = arith.mulf %425, %398 : vector<1x256xf32>
    %427 = arith.addf %423, %426 : vector<1x256xf32>
    %c15_i32_159 = arith.constant 15 : i32
    %428 = tpu.dynamic_rotate %427 by %c15_i32_159 dim 1 : vector<1x256xf32>, i32 -> vector<1x256xf32>
    %429 = arith.mulf %428, %2 : vector<1x256xf32>
    %430 = arith.addf %410, %429 : vector<1x256xf32>
    %c6_160 = arith.constant 6 : index
    %431 = memref.load %arg7[%c6_160] : memref<18xf32, #tpu.memory_space<smem>>
    %432 = vector.broadcast %431 : f32 to vector<1x256xf32>
    %433 = arith.mulf %432, %396 : vector<1x256xf32>
    %c7_161 = arith.constant 7 : index
    %434 = memref.load %arg7[%c7_161] : memref<18xf32, #tpu.memory_space<smem>>
    %435 = vector.broadcast %434 : f32 to vector<1x256xf32>
    %436 = arith.mulf %435, %398 : vector<1x256xf32>
    %437 = arith.addf %433, %436 : vector<1x256xf32>
    %c1_i32_162 = arith.constant 1 : i32
    %438 = tpu.dynamic_rotate %437 by %c1_i32_162 dim 1 : vector<1x256xf32>, i32 -> vector<1x256xf32>
    %439 = arith.mulf %438, %3 : vector<1x256xf32>
    %440 = arith.addf %420, %439 : vector<1x256xf32>
    %c8_163 = arith.constant 8 : index
    %441 = memref.load %arg7[%c8_163] : memref<18xf32, #tpu.memory_space<smem>>
    %442 = vector.broadcast %441 : f32 to vector<1x256xf32>
    %443 = arith.mulf %442, %396 : vector<1x256xf32>
    %c9_164 = arith.constant 9 : index
    %444 = memref.load %arg7[%c9_164] : memref<18xf32, #tpu.memory_space<smem>>
    %445 = vector.broadcast %444 : f32 to vector<1x256xf32>
    %446 = arith.mulf %445, %398 : vector<1x256xf32>
    %447 = arith.addf %443, %446 : vector<1x256xf32>
    %448 = arith.mulf %447, %4 : vector<1x256xf32>
    %449 = arith.addf %430, %448 : vector<1x256xf32>
    %c10_165 = arith.constant 10 : index
    %450 = memref.load %arg7[%c10_165] : memref<18xf32, #tpu.memory_space<smem>>
    %451 = vector.broadcast %450 : f32 to vector<1x256xf32>
    %452 = arith.mulf %451, %396 : vector<1x256xf32>
    %c11_166 = arith.constant 11 : index
    %453 = memref.load %arg7[%c11_166] : memref<18xf32, #tpu.memory_space<smem>>
    %454 = vector.broadcast %453 : f32 to vector<1x256xf32>
    %455 = arith.mulf %454, %398 : vector<1x256xf32>
    %456 = arith.addf %452, %455 : vector<1x256xf32>
    %c255_i32_167 = arith.constant 255 : i32
    %457 = tpu.dynamic_rotate %456 by %c255_i32_167 dim 1 : vector<1x256xf32>, i32 -> vector<1x256xf32>
    %458 = arith.mulf %457, %5 : vector<1x256xf32>
    %459 = arith.addf %440, %458 : vector<1x256xf32>
    %c12_168 = arith.constant 12 : index
    %460 = memref.load %arg7[%c12_168] : memref<18xf32, #tpu.memory_space<smem>>
    %461 = vector.broadcast %460 : f32 to vector<1x256xf32>
    %462 = arith.mulf %461, %396 : vector<1x256xf32>
    %c13_169 = arith.constant 13 : index
    %463 = memref.load %arg7[%c13_169] : memref<18xf32, #tpu.memory_space<smem>>
    %464 = vector.broadcast %463 : f32 to vector<1x256xf32>
    %465 = arith.mulf %464, %398 : vector<1x256xf32>
    %466 = arith.addf %462, %465 : vector<1x256xf32>
    %c241_i32_170 = arith.constant 241 : i32
    %467 = tpu.dynamic_rotate %466 by %c241_i32_170 dim 1 : vector<1x256xf32>, i32 -> vector<1x256xf32>
    %468 = arith.mulf %467, %6 : vector<1x256xf32>
    %469 = arith.addf %449, %468 : vector<1x256xf32>
    %c14_171 = arith.constant 14 : index
    %470 = memref.load %arg7[%c14_171] : memref<18xf32, #tpu.memory_space<smem>>
    %471 = vector.broadcast %470 : f32 to vector<1x256xf32>
    %472 = arith.mulf %471, %396 : vector<1x256xf32>
    %c15_172 = arith.constant 15 : index
    %473 = memref.load %arg7[%c15_172] : memref<18xf32, #tpu.memory_space<smem>>
    %474 = vector.broadcast %473 : f32 to vector<1x256xf32>
    %475 = arith.mulf %474, %398 : vector<1x256xf32>
    %476 = arith.addf %472, %475 : vector<1x256xf32>
    %c240_i32_173 = arith.constant 240 : i32
    %477 = tpu.dynamic_rotate %476 by %c240_i32_173 dim 1 : vector<1x256xf32>, i32 -> vector<1x256xf32>
    %478 = arith.mulf %477, %7 : vector<1x256xf32>
    %479 = arith.addf %459, %478 : vector<1x256xf32>
    %c16_174 = arith.constant 16 : index
    %480 = memref.load %arg7[%c16_174] : memref<18xf32, #tpu.memory_space<smem>>
    %481 = vector.broadcast %480 : f32 to vector<1x256xf32>
    %482 = arith.mulf %481, %396 : vector<1x256xf32>
    %c17_175 = arith.constant 17 : index
    %483 = memref.load %arg7[%c17_175] : memref<18xf32, #tpu.memory_space<smem>>
    %484 = vector.broadcast %483 : f32 to vector<1x256xf32>
    %485 = arith.mulf %484, %398 : vector<1x256xf32>
    %486 = arith.addf %482, %485 : vector<1x256xf32>
    %c239_i32_176 = arith.constant 239 : i32
    %487 = tpu.dynamic_rotate %486 by %c239_i32_176 dim 1 : vector<1x256xf32>, i32 -> vector<1x256xf32>
    %488 = arith.mulf %487, %8 : vector<1x256xf32>
    %489 = arith.addf %469, %488 : vector<1x256xf32>
    %490 = arith.addf %489, %479 : vector<1x256xf32>
    %491 = arith.negf %490 : vector<1x256xf32>
    %492 = math.exp %491 : vector<1x256xf32>
    %cst_177 = arith.constant 1.000000e+00 : f32
    %493 = vector.broadcast %cst_177 : f32 to vector<1x256xf32>
    %494 = arith.addf %493, %492 : vector<1x256xf32>
    %495 = arith.divf %493, %494 : vector<1x256xf32>
    %496 = vector.broadcast %495 : vector<1x256xf32> to vector<8x256xf32>
    %497 = arith.mulf %392, %496 : vector<8x256xf32>
    %498 = arith.addf %497, %358 : vector<8x256xf32>
    %cst_178 = arith.constant 0.000000e+00 : f32
    %499 = vector.broadcast %cst_178 : f32 to vector<8x256xf32>
    %500 = arith.maximumf %498, %499 : vector<8x256xf32>
    %c1_179 = arith.constant 1 : index
    %c0_180 = arith.constant 0 : index
    %c0_181 = arith.constant 0 : index
    %501 = vector.load %arg8[%c1_179, %c0_180, %c0_181] : memref<2x8x256xf32, #tpu.memory_space<vmem>>, vector<1x8x256xf32>
    %502 = vector.shape_cast %501 : vector<1x8x256xf32> to vector<8x256xf32>
    %503 = vector.shape_cast %500 : vector<8x256xf32> to vector<1x8x256xf32>
    tpu.vector_store %arg8[%c1_179, %c0_180, %c0_181], %503 {strides = array<i32>} : memref<2x8x256xf32, #tpu.memory_space<vmem>>, vector<1x8x256xf32>,
    return
  }
  func.func @transform_0(%arg0: i32) -> (i32, i32, i32) {
    %c0_i32 = arith.constant 0 : i32
    %c0_i32_0 = arith.constant 0 : i32
    %c0_i32_1 = arith.constant 0 : i32
    return %arg0, %c0_i32, %c0_i32_0 : i32, i32, i32
  }
  func.func @transform_1(%arg0: i32) -> (i32, i32) {
    %c0_i32 = arith.constant 0 : i32
    %c0_i32_0 = arith.constant 0 : i32
    %c0_i32_1 = arith.constant 0 : i32
    return %c0_i32, %c0_i32_0 : i32, i32
  }
  func.func @transform_2(%arg0: i32) -> (i32, i32) {
    %c0_i32 = arith.constant 0 : i32
    %c0_i32_0 = arith.constant 0 : i32
    %c0_i32_1 = arith.constant 0 : i32
    return %c0_i32, %c0_i32_0 : i32, i32
  }
  func.func @transform_3(%arg0: i32) -> (i32, i32) {
    %c0_i32 = arith.constant 0 : i32
    %c0_i32_0 = arith.constant 0 : i32
    %c0_i32_1 = arith.constant 0 : i32
    return %c0_i32, %c0_i32_0 : i32, i32
  }
  func.func @transform_4(%arg0: i32) -> (i32, i32) {
    %c0_i32 = arith.constant 0 : i32
    %c0_i32_0 = arith.constant 0 : i32
    %c0_i32_1 = arith.constant 0 : i32
    return %c0_i32, %c0_i32_0 : i32, i32
  }
  func.func @transform_5(%arg0: i32) -> (i32, i32) {
    %c0_i32 = arith.constant 0 : i32
    %c0_i32_0 = arith.constant 0 : i32
    %c0_i32_1 = arith.constant 0 : i32
    return %c0_i32, %c0_i32_0 : i32, i32
  }
  func.func @transform_6(%arg0: i32) -> i32 {
    %c0_i32 = arith.constant 0 : i32
    %c0_i32_0 = arith.constant 0 : i32
    return %c0_i32 : i32
  }
  func.func @transform_7(%arg0: i32) -> (i32, i32, i32) {
    %c0_i32 = arith.constant 0 : i32
    %c0_i32_0 = arith.constant 0 : i32
    %c0_i32_1 = arith.constant 0 : i32
    return %arg0, %c0_i32, %c0_i32_0 : i32, i32, i32
  }
}

</mosaic_0001>

<llo_original>
// kernel: tpu_custom_call.1
$region0: #{tpu_custom_call.1}
  #allocation0 [shape = 'u32[]', space=smem, size = 0x4, offset = 0x4, fixed_abs, tag = 'smem constant byte address 0x4 - core index']
  #allocation1 [shape = 'u32[144,128]{1,0:T(1,128)}', space=vmem, size = 0x12000, scoped, tag = 'internal scratch']
  #allocation2 [shape = 'f32[80,512]{1,0:T(8,128)}', space=vmem, size = 0x28000, scoped, tag = 'scratch operand']
  %s0 = inlined_call_operand.vmem [shape: f32[2,8,256], index: 0, kind: input, shape index: {}]
  %s1 = inlined_call_operand.hbm [shape: f32[9,256], index: 1, kind: input, shape index: {}]
  %s2 = inlined_call_operand.vmem [shape: bf16[16,80], index: 2, kind: input, shape index: {}]
  %s3 = inlined_call_operand.vmem [shape: f32[16,1], index: 3, kind: input, shape index: {}]
  %s4 = inlined_call_operand.vmem [shape: f32[8,4], index: 4, kind: input, shape index: {}]
  %s5 = inlined_call_operand.vmem [shape: f32[8,4], index: 5, kind: input, shape index: {}]
  %s6 = inlined_call_operand.vmem [shape: f32[18], index: 6, kind: input, shape index: {}]
  %s7 = inlined_call_operand.hbm [shape: f32[2,8,256], index: 7, kind: output, shape index: {}]
  %s8 = sld [smem:[#allocation0]]
  $region46: #{tpu_custom_call.1} parent=0
    _
  %s10 = ssub.s32 1, %s8
  %s11 = scalar_select 0, %s10, %s8
  $region1: #{tpu_custom_call.1} parent=0
    #allocation3 [shape = 'u8[16384]{0}', space=vmem, size = 0x4000, scoped, tag = 'input window, operand 1, single buffered']
    #allocation4 [shape = 's32[1]{0}', space=sflag, size = 0x4, scoped, tag = 'scoped memory for tpu_custom_call.1']
    #allocation5 [shape = 's32[1]{0}', space=sflag, size = 0x4, scoped, tag = 'scoped memory for tpu_custom_call.1']
    #allocation6 [shape = 's32[1]{0}', space=sflag, size = 0x4, scoped, tag = 'scoped memory for tpu_custom_call.1']
    #allocation7 [shape = 'u8[512]{0}', space=smem, size = 0x200, scoped, tag = 'input window, operand 6, single buffered']
    #allocation8 [shape = 'u8[16384]{0}', space=vmem, size = 0x4000, scoped, tag = 'output window, operand 0, single buffered']
    %12 = vsyncpa [#allocation4], 0
    %13 = vsyncpa [#allocation6], 0
    %14 = vsyncpa [#allocation5], 0
    // Predicated region
    $region2: #{tpu_custom_call.1} parent=1 // pred_check
      _
    $region3: #{tpu_custom_call.1} parent=1 // pred_check_branch
      %16 = sbr.rel (0) target = $region5
    $region4: #{tpu_custom_call.1} parent=1 // pred_region
      _
    $region5: #{tpu_custom_call.1} parent=1 // pred_fallthru
      _
    // Predicated region
    $region6: #{tpu_custom_call.1} parent=1 // pred_check
      _
    $region7: #{tpu_custom_call.1} parent=1 // pred_check_branch
      %18 = sbr.rel (0) target = $region9
    $region8: #{tpu_custom_call.1} parent=1 // pred_region
      %s20 = ssub.s32 512, 512
      %21 = vsyncadd [#allocation4], %s20
      %s22 = sshll.u32 [#allocation3], 4
      %s23 = int_to_ptr.vmem [resolvable:$true] %s22
      %28 = dma.hbm_to_vmem [thread:$0]  %s1, 512, %s23, [#allocation4], 256, 256, 16
    $region9: #{tpu_custom_call.1} parent=1 // pred_fallthru
      _
    // Predicated region
    $region10: #{tpu_custom_call.1} parent=1 // pred_check
      _
    $region11: #{tpu_custom_call.1} parent=1 // pred_check_branch
      %30 = sbr.rel (0) target = $region13
    $region12: #{tpu_custom_call.1} parent=1 // pred_region
      _
    $region13: #{tpu_custom_call.1} parent=1 // pred_fallthru
      _
    // Predicated region
    $region14: #{tpu_custom_call.1} parent=1 // pred_check
      _
    $region15: #{tpu_custom_call.1} parent=1 // pred_check_branch
      %32 = sbr.rel (0) target = $region17
    $region16: #{tpu_custom_call.1} parent=1 // pred_region
      _
    $region17: #{tpu_custom_call.1} parent=1 // pred_fallthru
      _
    // Predicated region
    $region18: #{tpu_custom_call.1} parent=1 // pred_check
      _
    $region19: #{tpu_custom_call.1} parent=1 // pred_check_branch
      %34 = sbr.rel (0) target = $region21
    $region20: #{tpu_custom_call.1} parent=1 // pred_region
      _
    $region21: #{tpu_custom_call.1} parent=1 // pred_fallthru
      _
    // Predicated region
    $region22: #{tpu_custom_call.1} parent=1 // pred_check
      _
    $region23: #{tpu_custom_call.1} parent=1 // pred_check_branch
      %36 = sbr.rel (0) target = $region25
    $region24: #{tpu_custom_call.1} parent=1 // pred_region
      _
    $region25: #{tpu_custom_call.1} parent=1 // pred_fallthru
      _
    // Predicated region
    $region26: #{tpu_custom_call.1} parent=1 // pred_check
      _
    $region27: #{tpu_custom_call.1} parent=1 // pred_check_branch
      %38 = sbr.rel (0) target = $region29
    $region28: #{tpu_custom_call.1} parent=1 // pred_region
      %s40 = ssub.s32 16, 16
      %41 = vsyncadd [#allocation6], %s40
      %s43 = sshll.u32 %s6, 4
      %s44 = int_to_ptr.vmem [resolvable:$true] %s43
      %46 = dma.vmem_to_smem %s44, 16, [#allocation7], [#allocation6]
    $region29: #{tpu_custom_call.1} parent=1 // pred_fallthru
      _
    // Predicated region
    $region30: #{tpu_custom_call.1} parent=1 // pred_check
      _
    $region31: #{tpu_custom_call.1} parent=1 // pred_check_branch
      %48 = sbr.rel (0) target = $region33
    $region32: #{tpu_custom_call.1} parent=1 // pred_region
      %49 = dma.done [#allocation4], 512
    $region33: #{tpu_custom_call.1} parent=1 // pred_fallthru
      _
    // Predicated region
    $region34: #{tpu_custom_call.1} parent=1 // pred_check
      _
    $region35: #{tpu_custom_call.1} parent=1 // pred_check_branch
      %51 = sbr.rel (0) target = $region37
    $region36: #{tpu_custom_call.1} parent=1 // pred_region
      %52 = dma.done [#allocation6], 16
    $region37: #{tpu_custom_call.1} parent=1 // pred_fallthru
      _
    %53 = sfence
    %v55 = vld [vmem:[#allocation3] ss:$8 sm:$0x3]
    %s56 = scalar_lea.vmem [#allocation3], 1
    %v57 = vld [vmem:[%s56] ss:$8 sm:$0x3]
    %s58 = scalar_lea.vmem [#allocation3], 2
    %v59 = vld [vmem:[%s58] ss:$8 sm:$0x3]
    %s60 = scalar_lea.vmem [#allocation3], 3
    %v61 = vld [vmem:[%s60] ss:$8 sm:$0x3]
    %s62 = scalar_lea.vmem [#allocation3], 4
    %v63 = vld [vmem:[%s62] ss:$8 sm:$0x3]
    %s64 = scalar_lea.vmem [#allocation3], 5
    %v65 = vld [vmem:[%s64] ss:$8 sm:$0x3]
    %s66 = scalar_lea.vmem [#allocation3], 6
    %v67 = vld [vmem:[%s66] ss:$8 sm:$0x3]
    %s68 = scalar_lea.vmem [#allocation3], 7
    %v69 = vld [vmem:[%s68] ss:$8 sm:$0x3]
    %s70 = scalar_lea.vmem [#allocation3], 16
    %v71 = vld [vmem:[%s70] ss:$8 sm:$0x3]
    %v72 = vld [vmem:[%s0] sm:$0xff]
    %v73 = vld [vmem:[%s0 + $0x8] sm:$0xff]
    %74 = vrot.lane.b32.xlu0 %v72, 17
    %v75 = vpop.permute.xlu0 %74
    %76 = vrot.lane.b32.xlu0 %v73, 17
    %v77 = vpop.permute.xlu0 %76
    %v78 = vlaneseq
    %v79 = vand.u32 %v78, 127
    %vm80 = vcmp.lt.s32.totalorder %v79, 17
    %v81 = vsel %vm80, %v75, %v77
    %v82 = vsel %vm80, %v77, %v75
    %v84 = vlaneseq
    %v85 = vshrl.u32 %v84, 7
    %v86 = vsub.s32 0, %v85
    %v87 = vrot.slane %v55, %v86
    %v88 = vlaneseq
    %v89 = vshrl.u32 %v88, 7
    %v90 = vsub.s32 1, %v89
    %v91 = vrot.slane %v55, %v90
    %v94 = vmul.f32 %v82, %v87
    %v95 = vmul.f32 %v81, %v91
    %96 = vst [vmem:[#allocation2] sm:$0xff] %v94
    %97 = vst [vmem:[#allocation2 + $0x8] sm:$0xff] %v95
    %vm98 = vcmp.gt.f32.partialorder %v55, 0.5
    %v99 = vsel %vm98, 1, 0
    %v100 = vlaneseq
    %v101 = vshrl.u32 %v100, 7
    %v102 = vsub.s32 0, %v101
    %v103 = vrot.slane %v99, %v102
    %v104 = vlaneseq
    %v105 = vshrl.u32 %v104, 7
    %v106 = vsub.s32 1, %v105
    %v107 = vrot.slane %v99, %v106
    %vm108 = vcmp.eq.s32.totalorder %v103, 1
    %vm109 = vcmp.eq.s32.totalorder %v107, 1
    %v110 = vsel %vm108, %v82, -inf
    %v111 = vsel %vm109, %v81, -inf
    %v112 = vmax.f32 %v72, %v110
    %v113 = vmax.f32 %v73, %v111
    %114 = vrot.lane.b32.xlu0 %v72, 16
    %v115 = vpop.permute.xlu0 %114
    %116 = vrot.lane.b32.xlu0 %v73, 16
    %v117 = vpop.permute.xlu0 %116
    %vm118 = vcmp.lt.s32.totalorder %v79, 16
    %v119 = vsel %vm118, %v115, %v117
    %v120 = vsel %vm118, %v117, %v115
    %v122 = vlaneseq
    %v123 = vshrl.u32 %v122, 7
    %v124 = vsub.s32 0, %v123
    %v125 = vrot.slane %v57, %v124
    %v126 = vlaneseq
    %v127 = vshrl.u32 %v126, 7
    %v128 = vsub.s32 1, %v127
    %v129 = vrot.slane %v57, %v128
    %v132 = vmul.f32 %v120, %v125
    %v133 = vmul.f32 %v119, %v129
    %134 = vst [vmem:[#allocation2 + $0x20] sm:$0xff] %v132
    %135 = vst [vmem:[#allocation2 + $0x28] sm:$0xff] %v133
    %vm136 = vcmp.gt.f32.partialorder %v57, 0.5
    %v137 = vsel %vm136, 1, 0
    %v138 = vlaneseq
    %v139 = vshrl.u32 %v138, 7
    %v140 = vsub.s32 0, %v139
    %v141 = vrot.slane %v137, %v140
    %v142 = vlaneseq
    %v143 = vshrl.u32 %v142, 7
    %v144 = vsub.s32 1, %v143
    %v145 = vrot.slane %v137, %v144
    %vm146 = vcmp.eq.s32.totalorder %v141, 1
    %vm147 = vcmp.eq.s32.totalorder %v145, 1
    %v148 = vsel %vm146, %v120, -inf
    %v149 = vsel %vm147, %v119, -inf
    %v150 = vmax.f32 %v112, %v148
    %v151 = vmax.f32 %v113, %v149
    %152 = vrot.lane.b32.xlu0 %v72, 15
    %v153 = vpop.permute.xlu0 %152
    %154 = vrot.lane.b32.xlu0 %v73, 15
    %v155 = vpop.permute.xlu0 %154
    %vm156 = vcmp.lt.s32.totalorder %v79, 15
    %v157 = vsel %vm156, %v153, %v155
    %v158 = vsel %vm156, %v155, %v153
    %v160 = vlaneseq
    %v161 = vshrl.u32 %v160, 7
    %v162 = vsub.s32 0, %v161
    %v163 = vrot.slane %v59, %v162
    %v164 = vlaneseq
    %v165 = vshrl.u32 %v164, 7
    %v166 = vsub.s32 1, %v165
    %v167 = vrot.slane %v59, %v166
    %v170 = vmul.f32 %v158, %v163
    %v171 = vmul.f32 %v157, %v167
    %172 = vst [vmem:[#allocation2 + $0x40] sm:$0xff] %v170
    %173 = vst [vmem:[#allocation2 + $0x48] sm:$0xff] %v171
    %vm174 = vcmp.gt.f32.partialorder %v59, 0.5
    %v175 = vsel %vm174, 1, 0
    %v176 = vlaneseq
    %v177 = vshrl.u32 %v176, 7
    %v178 = vsub.s32 0, %v177
    %v179 = vrot.slane %v175, %v178
    %v180 = vlaneseq
    %v181 = vshrl.u32 %v180, 7
    %v182 = vsub.s32 1, %v181
    %v183 = vrot.slane %v175, %v182
    %vm184 = vcmp.eq.s32.totalorder %v179, 1
    %vm185 = vcmp.eq.s32.totalorder %v183, 1
    %v186 = vsel %vm184, %v158, -inf
    %v187 = vsel %vm185, %v157, -inf
    %v188 = vmax.f32 %v150, %v186
    %v189 = vmax.f32 %v151, %v187
    %190 = vrot.lane.b32.xlu0 %v72, 1
    %v191 = vpop.permute.xlu0 %190
    %192 = vrot.lane.b32.xlu0 %v73, 1
    %v193 = vpop.permute.xlu0 %192
    %vm194 = vcmp.lt.s32.totalorder %v79, 1
    %v195 = vsel %vm194, %v191, %v193
    %v196 = vsel %vm194, %v193, %v191
    %v198 = vlaneseq
    %v199 = vshrl.u32 %v198, 7
    %v200 = vsub.s32 0, %v199
    %v201 = vrot.slane %v61, %v200
    %v202 = vlaneseq
    %v203 = vshrl.u32 %v202, 7
    %v204 = vsub.s32 1, %v203
    %v205 = vrot.slane %v61, %v204
    %v208 = vmul.f32 %v196, %v201
    %v209 = vmul.f32 %v195, %v205
    %210 = vst [vmem:[#allocation2 + $0x60] sm:$0xff] %v208
    %211 = vst [vmem:[#allocation2 + $0x68] sm:$0xff] %v209
    %vm212 = vcmp.gt.f32.partialorder %v61, 0.5
    %v213 = vsel %vm212, 1, 0
    %v214 = vlaneseq
    %v215 = vshrl.u32 %v214, 7
    %v216 = vsub.s32 0, %v215
    %v217 = vrot.slane %v213, %v216
    %v218 = vlaneseq
    %v219 = vshrl.u32 %v218, 7
    %v220 = vsub.s32 1, %v219
    %v221 = vrot.slane %v213, %v220
    %vm222 = vcmp.eq.s32.totalorder %v217, 1
    %vm223 = vcmp.eq.s32.totalorder %v221, 1
    %v224 = vsel %vm222, %v196, -inf
    %v225 = vsel %vm223, %v195, -inf
    %v226 = vmax.f32 %v188, %v224
    %v227 = vmax.f32 %v189, %v225
    %v229 = vlaneseq
    %v230 = vshrl.u32 %v229, 7
    %v231 = vsub.s32 0, %v230
    %v232 = vrot.slane %v63, %v231
    %v233 = vlaneseq
    %v234 = vshrl.u32 %v233, 7
    %v235 = vsub.s32 1, %v234
    %v236 = vrot.slane %v63, %v235
    %v239 = vmul.f32 %v72, %v232
    %v240 = vmul.f32 %v73, %v236
    %241 = vst [vmem:[#allocation2 + $0x80] sm:$0xff] %v239
    %242 = vst [vmem:[#allocation2 + $0x88] sm:$0xff] %v240
    %243 = vrot.lane.b32.xlu0 %v72, 127
    %v244 = vpop.permute.xlu0 %243
    %245 = vrot.lane.b32.xlu0 %v73, 127
    %v246 = vpop.permute.xlu0 %245
    %vm247 = vcmp.lt.s32.totalorder %v79, 127
    %v248 = vsel %vm247, %v244, %v246
    %v249 = vsel %vm247, %v246, %v244
    %v251 = vlaneseq
    %v252 = vshrl.u32 %v251, 7
    %v253 = vsub.s32 0, %v252
    %v254 = vrot.slane %v65, %v253
    %v255 = vlaneseq
    %v256 = vshrl.u32 %v255, 7
    %v257 = vsub.s32 1, %v256
    %v258 = vrot.slane %v65, %v257
    %v261 = vmul.f32 %v248, %v254
    %v262 = vmul.f32 %v249, %v258
    %263 = vst [vmem:[#allocation2 + $0xa0] sm:$0xff] %v261
    %264 = vst [vmem:[#allocation2 + $0xa8] sm:$0xff] %v262
    %vm265 = vcmp.gt.f32.partialorder %v65, 0.5
    %v266 = vsel %vm265, 1, 0
    %v267 = vlaneseq
    %v268 = vshrl.u32 %v267, 7
    %v269 = vsub.s32 0, %v268
    %v270 = vrot.slane %v266, %v269
    %v271 = vlaneseq
    %v272 = vshrl.u32 %v271, 7
    %v273 = vsub.s32 1, %v272
    %v274 = vrot.slane %v266, %v273
    %vm275 = vcmp.eq.s32.totalorder %v270, 1
    %vm276 = vcmp.eq.s32.totalorder %v274, 1
    %v277 = vsel %vm275, %v248, -inf
    %v278 = vsel %vm276, %v249, -inf
    %v279 = vmax.f32 %v226, %v277
    %v280 = vmax.f32 %v227, %v278
    %281 = vrot.lane.b32.xlu0 %v72, 113
    %v282 = vpop.permute.xlu0 %281
    %283 = vrot.lane.b32.xlu0 %v73, 113
    %v284 = vpop.permute.xlu0 %283
    %vm285 = vcmp.lt.s32.totalorder %v79, 113
    %v286 = vsel %vm285, %v282, %v284
    %v287 = vsel %vm285, %v284, %v282
    %v289 = vlaneseq
    %v290 = vshrl.u32 %v289, 7
    %v291 = vsub.s32 0, %v290
    %v292 = vrot.slane %v67, %v291
    %v293 = vlaneseq
    %v294 = vshrl.u32 %v293, 7
    %v295 = vsub.s32 1, %v294
    %v296 = vrot.slane %v67, %v295
    %v299 = vmul.f32 %v286, %v292
    %v300 = vmul.f32 %v287, %v296
    %301 = vst [vmem:[#allocation2 + $0xc0] sm:$0xff] %v299
    %302 = vst [vmem:[#allocation2 + $0xc8] sm:$0xff] %v300
    %vm303 = vcmp.gt.f32.partialorder %v67, 0.5
    %v304 = vsel %vm303, 1, 0
    %v305 = vlaneseq
    %v306 = vshrl.u32 %v305, 7
    %v307 = vsub.s32 0, %v306
    %v308 = vrot.slane %v304, %v307
    %v309 = vlaneseq
    %v310 = vshrl.u32 %v309, 7
    %v311 = vsub.s32 1, %v310
    %v312 = vrot.slane %v304, %v311
    %vm313 = vcmp.eq.s32.totalorder %v308, 1
    %vm314 = vcmp.eq.s32.totalorder %v312, 1
    %v315 = vsel %vm313, %v286, -inf
    %v316 = vsel %vm314, %v287, -inf
    %v317 = vmax.f32 %v279, %v315
    %v318 = vmax.f32 %v280, %v316
    %319 = vrot.lane.b32.xlu0 %v72, 112
    %v320 = vpop.permute.xlu0 %319
    %321 = vrot.lane.b32.xlu0 %v73, 112
    %v322 = vpop.permute.xlu0 %321
    %vm323 = vcmp.lt.s32.totalorder %v79, 112
    %v324 = vsel %vm323, %v320, %v322
    %v325 = vsel %vm323, %v322, %v320
    %v327 = vlaneseq
    %v328 = vshrl.u32 %v327, 7
    %v329 = vsub.s32 0, %v328
    %v330 = vrot.slane %v69, %v329
    %v331 = vlaneseq
    %v332 = vshrl.u32 %v331, 7
    %v333 = vsub.s32 1, %v332
    %v334 = vrot.slane %v69, %v333
    %v337 = vmul.f32 %v324, %v330
    %v338 = vmul.f32 %v325, %v334
    %339 = vst [vmem:[#allocation2 + $0xe0] sm:$0xff] %v337
    %340 = vst [vmem:[#allocation2 + $0xe8] sm:$0xff] %v338
    %vm341 = vcmp.gt.f32.partialorder %v69, 0.5
    %v342 = vsel %vm341, 1, 0
    %v343 = vlaneseq
    %v344 = vshrl.u32 %v343, 7
    %v345 = vsub.s32 0, %v344
    %v346 = vrot.slane %v342, %v345
    %v347 = vlaneseq
    %v348 = vshrl.u32 %v347, 7
    %v349 = vsub.s32 1, %v348
    %v350 = vrot.slane %v342, %v349
    %vm351 = vcmp.eq.s32.totalorder %v346, 1
    %vm352 = vcmp.eq.s32.totalorder %v350, 1
    %v353 = vsel %vm351, %v324, -inf
    %v354 = vsel %vm352, %v325, -inf
    %v355 = vmax.f32 %v317, %v353
    %v356 = vmax.f32 %v318, %v354
    %357 = vrot.lane.b32.xlu0 %v72, 111
    %v358 = vpop.permute.xlu0 %357
    %359 = vrot.lane.b32.xlu0 %v73, 111
    %v360 = vpop.permute.xlu0 %359
    %vm361 = vcmp.lt.s32.totalorder %v79, 111
    %v362 = vsel %vm361, %v358, %v360
    %v363 = vsel %vm361, %v360, %v358
    %v365 = vlaneseq
    %v366 = vshrl.u32 %v365, 7
    %v367 = vsub.s32 0, %v366
    %v368 = vrot.slane %v71, %v367
    %v369 = vlaneseq
    %v370 = vshrl.u32 %v369, 7
    %v371 = vsub.s32 1, %v370
    %v372 = vrot.slane %v71, %v371
    %v375 = vmul.f32 %v362, %v368
    %v376 = vmul.f32 %v363, %v372
    %377 = vst [vmem:[#allocation2 + $0x100] sm:$0xff] %v375
    %378 = vst [vmem:[#allocation2 + $0x108] sm:$0xff] %v376
    %vm379 = vcmp.gt.f32.partialorder %v71, 0.5
    %v380 = vsel %vm379, 1, 0
    %v381 = vlaneseq
    %v382 = vshrl.u32 %v381, 7
    %v383 = vsub.s32 0, %v382
    %v384 = vrot.slane %v380, %v383
    %v385 = vlaneseq
    %v386 = vshrl.u32 %v385, 7
    %v387 = vsub.s32 1, %v386
    %v388 = vrot.slane %v380, %v387
    %vm389 = vcmp.eq.s32.totalorder %v384, 1
    %vm390 = vcmp.eq.s32.totalorder %v388, 1
    %v391 = vsel %vm389, %v362, -inf
    %v392 = vsel %vm390, %v363, -inf
    %v393 = vmax.f32 %v355, %v391
    %v394 = vmax.f32 %v356, %v392
    %395 = vst [vmem:[#allocation2 + $0x120] sm:$0xff] %v393
    %396 = vst [vmem:[#allocation2 + $0x128] sm:$0xff] %v394
    %s397 = scalar_lea.vmem %s0, 16
    %v398 = vld [vmem:[%s397] sm:$0xff]
    %v399 = vld [vmem:[%s397 + $0x8] sm:$0xff]
    %400 = vrot.lane.b32.xlu0 %v398, 17
    %v401 = vpop.permute.xlu0 %400
    %402 = vrot.lane.b32.xlu0 %v399, 17
    %v403 = vpop.permute.xlu0 %402
    %v404 = vsel %vm80, %v401, %v403
    %v405 = vsel %vm80, %v403, %v401
    %v406 = vmul.f32 %v405, %v87
    %v407 = vmul.f32 %v404, %v91
    %408 = vst [vmem:[#allocation2 + $0x10] sm:$0xff] %v406
    %409 = vst [vmem:[#allocation2 + $0x18] sm:$0xff] %v407
    %v410 = vsel %vm108, %v405, -inf
    %v411 = vsel %vm109, %v404, -inf
    %v412 = vmax.f32 %v398, %v410
    %v413 = vmax.f32 %v399, %v411
    %414 = vrot.lane.b32.xlu0 %v398, 16
    %v415 = vpop.permute.xlu0 %414
    %416 = vrot.lane.b32.xlu0 %v399, 16
    %v417 = vpop.permute.xlu0 %416
    %v418 = vsel %vm118, %v415, %v417
    %v419 = vsel %vm118, %v417, %v415
    %v420 = vmul.f32 %v419, %v125
    %v421 = vmul.f32 %v418, %v129
    %422 = vst [vmem:[#allocation2 + $0x30] sm:$0xff] %v420
    %423 = vst [vmem:[#allocation2 + $0x38] sm:$0xff] %v421
    %v424 = vsel %vm146, %v419, -inf
    %v425 = vsel %vm147, %v418, -inf
    %v426 = vmax.f32 %v412, %v424
    %v427 = vmax.f32 %v413, %v425
    %428 = vrot.lane.b32.xlu0 %v398, 15
    %v429 = vpop.permute.xlu0 %428
    %430 = vrot.lane.b32.xlu0 %v399, 15
    %v431 = vpop.permute.xlu0 %430
    %v432 = vsel %vm156, %v429, %v431
    %v433 = vsel %vm156, %v431, %v429
    %v434 = vmul.f32 %v433, %v163
    %v435 = vmul.f32 %v432, %v167
    %436 = vst [vmem:[#allocation2 + $0x50] sm:$0xff] %v434
    %437 = vst [vmem:[#allocation2 + $0x58] sm:$0xff] %v435
    %v438 = vsel %vm184, %v433, -inf
    %v439 = vsel %vm185, %v432, -inf
    %v440 = vmax.f32 %v426, %v438
    %v441 = vmax.f32 %v427, %v439
    %442 = vrot.lane.b32.xlu0 %v398, 1
    %v443 = vpop.permute.xlu0 %442
    %444 = vrot.lane.b32.xlu0 %v399, 1
    %v445 = vpop.permute.xlu0 %444
    %v446 = vsel %vm194, %v443, %v445
    %v447 = vsel %vm194, %v445, %v443
    %v448 = vmul.f32 %v447, %v201
    %v449 = vmul.f32 %v446, %v205
    %450 = vst [vmem:[#allocation2 + $0x70] sm:$0xff] %v448
    %451 = vst [vmem:[#allocation2 + $0x78] sm:$0xff] %v449
    %v452 = vsel %vm222, %v447, -inf
    %v453 = vsel %vm223, %v446, -inf
    %v454 = vmax.f32 %v440, %v452
    %v455 = vmax.f32 %v441, %v453
    %v456 = vmul.f32 %v398, %v232
    %v457 = vmul.f32 %v399, %v236
    %458 = vst [vmem:[#allocation2 + $0x90] sm:$0xff] %v456
    %459 = vst [vmem:[#allocation2 + $0x98] sm:$0xff] %v457
    %460 = vrot.lane.b32.xlu0 %v398, 127
    %v461 = vpop.permute.xlu0 %460
    %462 = vrot.lane.b32.xlu0 %v399, 127
    %v463 = vpop.permute.xlu0 %462
    %v464 = vsel %vm247, %v461, %v463
    %v465 = vsel %vm247, %v463, %v461
    %v466 = vmul.f32 %v464, %v254
    %v467 = vmul.f32 %v465, %v258
    %468 = vst [vmem:[#allocation2 + $0xb0] sm:$0xff] %v466
    %469 = vst [vmem:[#allocation2 + $0xb8] sm:$0xff] %v467
    %v470 = vsel %vm275, %v464, -inf
    %v471 = vsel %vm276, %v465, -inf
    %v472 = vmax.f32 %v454, %v470
    %v473 = vmax.f32 %v455, %v471
    %474 = vrot.lane.b32.xlu0 %v398, 113
    %v475 = vpop.permute.xlu0 %474
    %476 = vrot.lane.b32.xlu0 %v399, 113
    %v477 = vpop.permute.xlu0 %476
    %v478 = vsel %vm285, %v475, %v477
    %v479 = vsel %vm285, %v477, %v475
    %v480 = vmul.f32 %v478, %v292
    %v481 = vmul.f32 %v479, %v296
    %482 = vst [vmem:[#allocation2 + $0xd0] sm:$0xff] %v480
    %483 = vst [vmem:[#allocation2 + $0xd8] sm:$0xff] %v481
    %v484 = vsel %vm313, %v478, -inf
    %v485 = vsel %vm314, %v479, -inf
    %v486 = vmax.f32 %v472, %v484
    %v487 = vmax.f32 %v473, %v485
    %488 = vrot.lane.b32.xlu0 %v398, 112
    %v489 = vpop.permute.xlu0 %488
    %490 = vrot.lane.b32.xlu0 %v399, 112
    %v491 = vpop.permute.xlu0 %490
    %v492 = vsel %vm323, %v489, %v491
    %v493 = vsel %vm323, %v491, %v489
    %v494 = vmul.f32 %v492, %v330
    %v495 = vmul.f32 %v493, %v334
    %496 = vst [vmem:[#allocation2 + $0xf0] sm:$0xff] %v494
    %497 = vst [vmem:[#allocation2 + $0xf8] sm:$0xff] %v495
    %v498 = vsel %vm351, %v492, -inf
    %v499 = vsel %vm352, %v493, -inf
    %v500 = vmax.f32 %v486, %v498
    %v501 = vmax.f32 %v487, %v499
    %502 = vrot.lane.b32.xlu0 %v398, 111
    %v503 = vpop.permute.xlu0 %502
    %504 = vrot.lane.b32.xlu0 %v399, 111
    %v505 = vpop.permute.xlu0 %504
    %v506 = vsel %vm361, %v503, %v505
    %v507 = vsel %vm361, %v505, %v503
    %v508 = vmul.f32 %v506, %v368
    %v509 = vmul.f32 %v507, %v372
    %510 = vst [vmem:[#allocation2 + $0x110] sm:$0xff] %v508
    %511 = vst [vmem:[#allocation2 + $0x118] sm:$0xff] %v509
    %v512 = vsel %vm389, %v506, -inf
    %v513 = vsel %vm390, %v507, -inf
    %v514 = vmax.f32 %v500, %v512
    %v515 = vmax.f32 %v501, %v513
    %516 = vst [vmem:[#allocation2 + $0x130] sm:$0xff] %v514
    %517 = vst [vmem:[#allocation2 + $0x138] sm:$0xff] %v515
    %v518 = vld [vmem:[%s2] sm:$0xf]
    %v519 = vld [vmem:[%s2 + $0x4] sm:$0xf]
    %v520 = vld [vmem:[#allocation2] sm:$0xff]
    %v521 = vld [vmem:[#allocation2 + $0x8] sm:$0xff]
    %v522 = vld [vmem:[#allocation2 + $0x10] sm:$0xff]
    %v523 = vld [vmem:[#allocation2 + $0x18] sm:$0xff]
    %v524 = vld [vmem:[#allocation2 + $0x20] sm:$0xff]
    %v525 = vld [vmem:[#allocation2 + $0x28] sm:$0xff]
    %v526 = vld [vmem:[#allocation2 + $0x30] sm:$0xff]
    %v527 = vld [vmem:[#allocation2 + $0x38] sm:$0xff]
    %v528 = vld [vmem:[#allocation2 + $0x40] sm:$0xff]
    %v529 = vld [vmem:[#allocation2 + $0x48] sm:$0xff]
    %v530 = vld [vmem:[#allocation2 + $0x50] sm:$0xff]
    %v531 = vld [vmem:[#allocation2 + $0x58] sm:$0xff]
    %v532 = vld [vmem:[#allocation2 + $0x60] sm:$0xff]
    %v533 = vld [vmem:[#allocation2 + $0x68] sm:$0xff]
    %v534 = vld [vmem:[#allocation2 + $0x70] sm:$0xff]
    %v535 = vld [vmem:[#allocation2 + $0x78] sm:$0xff]
    %v536 = vld [vmem:[#allocation2 + $0x80] sm:$0xff]
    %v537 = vld [vmem:[#allocation2 + $0x88] sm:$0xff]
    %v538 = vld [vmem:[#allocation2 + $0x90] sm:$0xff]
    %v539 = vld [vmem:[#allocation2 + $0x98] sm:$0xff]
    %v540 = vld [vmem:[#allocation2 + $0xa0] sm:$0xff]
    %v541 = vld [vmem:[#allocation2 + $0xa8] sm:$0xff]
    %v542 = vld [vmem:[#allocation2 + $0xb0] sm:$0xff]
    %v543 = vld [vmem:[#allocation2 + $0xb8] sm:$0xff]
    %v544 = vld [vmem:[#allocation2 + $0xc0] sm:$0xff]
    %v545 = vld [vmem:[#allocation2 + $0xc8] sm:$0xff]
    %v546 = vld [vmem:[#allocation2 + $0xd0] sm:$0xff]
    %v547 = vld [vmem:[#allocation2 + $0xd8] sm:$0xff]
    %v548 = vld [vmem:[#allocation2 + $0xe0] sm:$0xff]
    %v549 = vld [vmem:[#allocation2 + $0xe8] sm:$0xff]
    %v550 = vld [vmem:[#allocation2 + $0xf0] sm:$0xff]
    %v551 = vld [vmem:[#allocation2 + $0xf8] sm:$0xff]
    %v552 = vld [vmem:[#allocation2 + $0x100] sm:$0xff]
    %v553 = vld [vmem:[#allocation2 + $0x108] sm:$0xff]
    %v554 = vld [vmem:[#allocation2 + $0x110] sm:$0xff]
    %v555 = vld [vmem:[#allocation2 + $0x118] sm:$0xff]
    %v556 = vld [vmem:[#allocation2 + $0x120] sm:$0xff]
    %v557 = vld [vmem:[#allocation2 + $0x128] sm:$0xff]
    %v558 = vld [vmem:[#allocation2 + $0x130] sm:$0xff]
    %v559 = vld [vmem:[#allocation2 + $0x138] sm:$0xff]
    %v560 = vpack.c.bf16 %v524, %v520
    %v561 = vpack.c.bf16 %v525, %v521
    %v562 = vpack.c.bf16 %v526, %v522
    %v563 = vpack.c.bf16 %v527, %v523
    %v564 = vpack.c.bf16 %v532, %v528
    %v565 = vpack.c.bf16 %v533, %v529
    %v566 = vpack.c.bf16 %v534, %v530
    %v567 = vpack.c.bf16 %v535, %v531
    %v568 = vpack.c.bf16 %v540, %v536
    %v569 = vpack.c.bf16 %v541, %v537
    %v570 = vpack.c.bf16 %v542, %v538
    %v571 = vpack.c.bf16 %v543, %v539
    %v572 = vpack.c.bf16 %v548, %v544
    %v573 = vpack.c.bf16 %v549, %v545
    %v574 = vpack.c.bf16 %v550, %v546
    %v575 = vpack.c.bf16 %v551, %v547
    %v576 = vpack.c.bf16 %v556, %v552
    %v577 = vpack.c.bf16 %v557, %v553
    %v578 = vpack.c.bf16 %v558, %v554
    %v579 = vpack.c.bf16 %v559, %v555
    %v580 = vld [vmem:[%s3] sm:$0xff]
    %v581 = vld [vmem:[%s3 + $0x8] sm:$0xff]
    %583 = vset.pattern.permute.xlu0 0
    %584 = vperm.xlu0 %583, %v580
    %v585 = vpop.permute.xlu0 %584
    %588 = vset.pattern.permute.xlu0 0
    %589 = vperm.xlu0 %588, %v581
    %v590 = vpop.permute.xlu0 %589
    %v594 = vunpack.c.l.b16 %v518
    %v595 = vunpack.c.l.b16 %v519
    %v596 = vpack.c.b16 %v595, %v594
    %vm597 = vcmask 654336
    %v599 = vsel %vm597, %v596, 0
    %601 = vmatprep.subr.bf16.mxu0 %v561
    %602 = vmatpush1.bf16.msra.mxu0 %v560
    %603 = vmatprep.subr.bf16.mxu0 %v565
    %604 = vmatpush1.bf16.msra.mxu0 %v564
    %605 = vmatprep.subr.bf16.mxu0 %v569
    %606 = vmatpush1.bf16.msra.mxu0 %v568
    %607 = vmatprep.subr.bf16.mxu0 %v573
    %608 = vmatpush1.bf16.msra.mxu0 %v572
    %609 = vmatprep.subr.bf16.mxu0 %v577
    %610 = vmatpush1.bf16.msra.mxu0 %v576
    %611 = vmatprep.subr.bf16.mxu0 0
    %612 = vmatpush1.bf16.msra.mxu0 0
    %613 = vmatprep.subr.bf16.mxu0 0
    %614 = vmatpush1.bf16.msra.mxu0 0
    %615 = vmatprep.subr.bf16.mxu0 0
    %616 = vmatpush1.bf16.msra.mxu0 0
    %617 = vmatprep.subr.bf16.mxu0 0
    %618 = vmatpush1.bf16.msra.mxu0 0
    %619 = vmatprep.subr.bf16.mxu0 0
    %620 = vmatpush1.bf16.msra.mxu0 0
    %621 = vmatprep.subr.bf16.mxu0 0
    %622 = vmatpush1.bf16.msra.mxu0 0
    %623 = vmatprep.subr.bf16.mxu0 0
    %624 = vmatpush1.bf16.msra.mxu0 0
    %625 = vmatprep.subr.bf16.mxu0 0
    %626 = vmatpush1.bf16.msra.mxu0 0
    %627 = vmatprep.subr.bf16.mxu0 0
    %628 = vmatpush1.bf16.msra.mxu0 0
    %629 = vmatprep.subr.bf16.mxu0 0
    %630 = vmatpush1.bf16.msra.mxu0 0
    %631 = vmatprep.subr.bf16.mxu0 0
    %632 = vmatpush1.bf16.msra.mxu0 0
    %633 = vmatprep.mubr.bf16.mxu0 0
    %634 = vmatmul.mubr.bf16.gmra.mrb[0].mxu0 %v599
    %v635 = vpop.f32.mrb[0].mxu0
    %v636 = vadd.f32 %v585, %v635
    %v637 = vpop.f32.mrb[0].mxu0
    %v638 = vadd.f32 %v585, %v637
    %v639 = vpop.f32.mrb[0].mxu0
    %v640 = vadd.f32 %v590, %v639
    %v641 = vpop.f32.mrb[0].mxu0
    %v642 = vadd.f32 %v590, %v641
    %643 = vdwg.mxu0
    %644 = vmatprep.subr.bf16.mxu0 %v563
    %645 = vmatpush1.bf16.msra.mxu0 %v562
    %646 = vmatprep.subr.bf16.mxu0 %v567
    %647 = vmatpush1.bf16.msra.mxu0 %v566
    %648 = vmatprep.subr.bf16.mxu0 %v571
    %649 = vmatpush1.bf16.msra.mxu0 %v570
    %650 = vmatprep.subr.bf16.mxu0 %v575
    %651 = vmatpush1.bf16.msra.mxu0 %v574
    %652 = vmatprep.subr.bf16.mxu0 %v579
    %653 = vmatpush1.bf16.msra.mxu0 %v578
    %654 = vmatprep.subr.bf16.mxu0 0
    %655 = vmatpush1.bf16.msra.mxu0 0
    %656 = vmatprep.subr.bf16.mxu0 0
    %657 = vmatpush1.bf16.msra.mxu0 0
    %658 = vmatprep.subr.bf16.mxu0 0
    %659 = vmatpush1.bf16.msra.mxu0 0
    %660 = vmatprep.subr.bf16.mxu0 0
    %661 = vmatpush1.bf16.msra.mxu0 0
    %662 = vmatprep.subr.bf16.mxu0 0
    %663 = vmatpush1.bf16.msra.mxu0 0
    %664 = vmatprep.subr.bf16.mxu0 0
    %665 = vmatpush1.bf16.msra.mxu0 0
    %666 = vmatprep.subr.bf16.mxu0 0
    %667 = vmatpush1.bf16.msra.mxu0 0
    %668 = vmatprep.subr.bf16.mxu0 0
    %669 = vmatpush1.bf16.msra.mxu0 0
    %670 = vmatprep.subr.bf16.mxu0 0
    %671 = vmatpush1.bf16.msra.mxu0 0
    %672 = vmatprep.subr.bf16.mxu0 0
    %673 = vmatpush1.bf16.msra.mxu0 0
    %674 = vmatprep.subr.bf16.mxu0 0
    %675 = vmatpush1.bf16.msra.mxu0 0
    %676 = vmatprep.mubr.bf16.mxu0 0
    %677 = vmatmul.mubr.bf16.gmra.mrb[0].mxu0 %v599
    %v678 = vpop.f32.mrb[0].mxu0
    %v679 = vadd.f32 %v585, %v678
    %v680 = vpop.f32.mrb[0].mxu0
    %v681 = vadd.f32 %v585, %v680
    %v682 = vpop.f32.mrb[0].mxu0
    %v683 = vadd.f32 %v590, %v682
    %v684 = vpop.f32.mrb[0].mxu0
    %v685 = vadd.f32 %v590, %v684
    %686 = vdwg.mxu0
    %v687 = vld [vmem:[%s4] sm:$0xff]
    %v688 = vld [vmem:[%s5] sm:$0xff]
    %v689 = vmax.f32 %v636, 0.0
    %v690 = vmax.f32 %v638, 0.0
    %v691 = vadd.f32 %v689, %v690
    %692 = vadd.xlane.f32.xlu0 %v691
    %v693 = vpop.xlane.xlu0 %692
    %v694 = vrcp.pop 256.0
    %v695 = vmul.f32 %v693, %v694
    %v696 = vmax.f32 %v689, %v690
    %697 = vmax.xlane.f32.xlu0 %v696
    %v698 = vpop.xlane.xlu0 %697
    %v699 = vmul.f32 %v687, %v695
    %vm700 = vcmask 31744
    %v701 = vsel %vm700, %v699, 0.0
    %v702 = vrot.slane %v701, 4
    %v703 = vadd.f32 %v701, %v702
    %v704 = vrot.slane %v703, 2
    %v705 = vadd.f32 %v703, %v704
    %v706 = vrot.slane %v705, 1
    %v707 = vadd.f32 %v705, %v706
    %v708 = vmax.f32 %v707, 0.0
    %v709 = vmul.f32 %v688, %v708
    %v710 = vsel %vm700, %v709, 0.0
    %711 = vadd.xlane.f32.xlu0 %v710
    %v712 = vpop.xlane.xlu0 %711
    %v713 = vmul.f32 %v687, %v698
    %v714 = vsel %vm700, %v713, 0.0
    %v715 = vrot.slane %v714, 4
    %v716 = vadd.f32 %v714, %v715
    %v717 = vrot.slane %v716, 2
    %v718 = vadd.f32 %v716, %v717
    %v719 = vrot.slane %v718, 1
    %v720 = vadd.f32 %v718, %v719
    %v721 = vmax.f32 %v720, 0.0
    %v722 = vmul.f32 %v688, %v721
    %v723 = vsel %vm700, %v722, 0.0
    %724 = vadd.xlane.f32.xlu0 %v723
    %v725 = vpop.xlane.xlu0 %724
    %v726 = vadd.f32 %v712, %v725
    %v727 = vxor.u32 %v726, 2147483648
    %v728 = vmul.f32 %v727, 1.442695
    %v729 = vpow.pop %v728
    %v730 = vadd.f32 %v729, 1.0
    %v731 = vrcp.pop %v730
    %v732 = vmul.f32 1.0, %v731
    %v733 = vmul.f32 %v689, %v732
    %v734 = vmul.f32 %v690, %v732
    %v735 = vrot.slane %v733, 4
    %v736 = vadd.f32 %v733, %v735
    %v737 = vrot.slane %v736, 2
    %v738 = vadd.f32 %v736, %v737
    %v739 = vrot.slane %v738, 1
    %v740 = vadd.f32 %v738, %v739
    %v741 = vrot.slane %v734, 4
    %v742 = vadd.f32 %v734, %v741
    %v743 = vrot.slane %v742, 2
    %v744 = vadd.f32 %v742, %v743
    %v745 = vrot.slane %v744, 1
    %v746 = vadd.f32 %v744, %v745
    %v747 = vmul.f32 %v740, 0.125
    %v748 = vmul.f32 %v746, 0.125
    %v749 = vrot.slane %v733, 4
    %v750 = vmax.f32 %v733, %v749
    %v751 = vrot.slane %v750, 2
    %v752 = vmax.f32 %v750, %v751
    %v753 = vrot.slane %v752, 1
    %v754 = vmax.f32 %v752, %v753
    %v755 = vrot.slane %v734, 4
    %v756 = vmax.f32 %v734, %v755
    %v757 = vrot.slane %v756, 2
    %v758 = vmax.f32 %v756, %v757
    %v759 = vrot.slane %v758, 1
    %v760 = vmax.f32 %v758, %v759
    %s761 = sld [smem:[#allocation7]]
    %v762 = vstv %s761
    %v763 = vmul.f32 %v762, %v747
    %v764 = vmul.f32 %v762, %v748
    %s765 = sld [smem:[#allocation7 + $0x1]]
    %v766 = vstv %s765
    %v767 = vmul.f32 %v766, %v754
    %v768 = vmul.f32 %v766, %v760
    %v769 = vadd.f32 %v763, %v767
    %v770 = vadd.f32 %v764, %v768
    %771 = vrot.lane.b32.xlu0 %v769, 17
    %v772 = vpop.permute.xlu0 %771
    %773 = vrot.lane.b32.xlu0 %v770, 17
    %v774 = vpop.permute.xlu0 %773
    %v775 = vsel %vm80, %v772, %v774
    %v776 = vsel %vm80, %v774, %v772
    %v777 = vmul.f32 %v776, %v87
    %v778 = vmul.f32 %v775, %v91
    %v779 = vadd.f32 %v777, 0.0
    %v780 = vadd.f32 %v778, 0.0
    %s781 = sld [smem:[#allocation7 + $0x2]]
    %v782 = vstv %s781
    %v783 = vmul.f32 %v782, %v747
    %v784 = vmul.f32 %v782, %v748
    %s785 = sld [smem:[#allocation7 + $0x3]]
    %v786 = vstv %s785
    %v787 = vmul.f32 %v786, %v754
    %v788 = vmul.f32 %v786, %v760
    %v789 = vadd.f32 %v783, %v787
    %v790 = vadd.f32 %v784, %v788
    %791 = vrot.lane.b32.xlu0 %v789, 16
    %v792 = vpop.permute.xlu0 %791
    %793 = vrot.lane.b32.xlu0 %v790, 16
    %v794 = vpop.permute.xlu0 %793
    %v795 = vsel %vm118, %v792, %v794
    %v796 = vsel %vm118, %v794, %v792
    %v797 = vmul.f32 %v796, %v125
    %v798 = vmul.f32 %v795, %v129
    %v799 = vadd.f32 %v797, 0.0
    %v800 = vadd.f32 %v798, 0.0
    %s801 = sld [smem:[#allocation7 + $0x4]]
    %v802 = vstv %s801
    %v803 = vmul.f32 %v802, %v747
    %v804 = vmul.f32 %v802, %v748
    %s805 = sld [smem:[#allocation7 + $0x5]]
    %v806 = vstv %s805
    %v807 = vmul.f32 %v806, %v754
    %v808 = vmul.f32 %v806, %v760
    %v809 = vadd.f32 %v803, %v807
    %v810 = vadd.f32 %v804, %v808
    %811 = vrot.lane.b32.xlu0 %v809, 15
    %v812 = vpop.permute.xlu0 %811
    %813 = vrot.lane.b32.xlu0 %v810, 15
    %v814 = vpop.permute.xlu0 %813
    %v815 = vsel %vm156, %v812, %v814
    %v816 = vsel %vm156, %v814, %v812
    %v817 = vmul.f32 %v816, %v163
    %v818 = vmul.f32 %v815, %v167
    %v819 = vadd.f32 %v779, %v817
    %v820 = vadd.f32 %v780, %v818
    %s821 = sld [smem:[#allocation7 + $0x6]]
    %v822 = vstv %s821
    %v823 = vmul.f32 %v822, %v747
    %v824 = vmul.f32 %v822, %v748
    %s825 = sld [smem:[#allocation7 + $0x7]]
    %v826 = vstv %s825
    %v827 = vmul.f32 %v826, %v754
    %v828 = vmul.f32 %v826, %v760
    %v829 = vadd.f32 %v823, %v827
    %v830 = vadd.f32 %v824, %v828
    %831 = vrot.lane.b32.xlu0 %v829, 1
    %v832 = vpop.permute.xlu0 %831
    %833 = vrot.lane.b32.xlu0 %v830, 1
    %v834 = vpop.permute.xlu0 %833
    %v835 = vsel %vm194, %v832, %v834
    %v836 = vsel %vm194, %v834, %v832
    %v837 = vmul.f32 %v836, %v201
    %v838 = vmul.f32 %v835, %v205
    %v839 = vadd.f32 %v799, %v837
    %v840 = vadd.f32 %v800, %v838
    %s841 = sld [smem:[#allocation7 + $0x8]]
    %v842 = vstv %s841
    %v843 = vmul.f32 %v842, %v747
    %v844 = vmul.f32 %v842, %v748
    %s845 = sld [smem:[#allocation7 + $0x9]]
    %v846 = vstv %s845
    %v847 = vmul.f32 %v846, %v754
    %v848 = vmul.f32 %v846, %v760
    %v849 = vadd.f32 %v843, %v847
    %v850 = vadd.f32 %v844, %v848
    %v851 = vmul.f32 %v849, %v232
    %v852 = vmul.f32 %v850, %v236
    %v853 = vadd.f32 %v819, %v851
    %v854 = vadd.f32 %v820, %v852
    %s855 = sld [smem:[#allocation7 + $0xa]]
    %v856 = vstv %s855
    %v857 = vmul.f32 %v856, %v747
    %v858 = vmul.f32 %v856, %v748
    %s859 = sld [smem:[#allocation7 + $0xb]]
    %v860 = vstv %s859
    %v861 = vmul.f32 %v860, %v754
    %v862 = vmul.f32 %v860, %v760
    %v863 = vadd.f32 %v857, %v861
    %v864 = vadd.f32 %v858, %v862
    %865 = vrot.lane.b32.xlu0 %v863, 127
    %v866 = vpop.permute.xlu0 %865
    %867 = vrot.lane.b32.xlu0 %v864, 127
    %v868 = vpop.permute.xlu0 %867
    %v869 = vsel %vm247, %v866, %v868
    %v870 = vsel %vm247, %v868, %v866
    %v871 = vmul.f32 %v869, %v254
    %v872 = vmul.f32 %v870, %v258
    %v873 = vadd.f32 %v839, %v871
    %v874 = vadd.f32 %v840, %v872
    %s875 = sld [smem:[#allocation7 + $0xc]]
    %v876 = vstv %s875
    %v877 = vmul.f32 %v876, %v747
    %v878 = vmul.f32 %v876, %v748
    %s879 = sld [smem:[#allocation7 + $0xd]]
    %v880 = vstv %s879
    %v881 = vmul.f32 %v880, %v754
    %v882 = vmul.f32 %v880, %v760
    %v883 = vadd.f32 %v877, %v881
    %v884 = vadd.f32 %v878, %v882
    %885 = vrot.lane.b32.xlu0 %v883, 113
    %v886 = vpop.permute.xlu0 %885
    %887 = vrot.lane.b32.xlu0 %v884, 113
    %v888 = vpop.permute.xlu0 %887
    %v889 = vsel %vm285, %v886, %v888
    %v890 = vsel %vm285, %v888, %v886
    %v891 = vmul.f32 %v889, %v292
    %v892 = vmul.f32 %v890, %v296
    %v893 = vadd.f32 %v853, %v891
    %v894 = vadd.f32 %v854, %v892
    %s895 = sld [smem:[#allocation7 + $0xe]]
    %v896 = vstv %s895
    %v897 = vmul.f32 %v896, %v747
    %v898 = vmul.f32 %v896, %v748
    %s899 = sld [smem:[#allocation7 + $0xf]]
    %v900 = vstv %s899
    %v901 = vmul.f32 %v900, %v754
    %v902 = vmul.f32 %v900, %v760
    %v903 = vadd.f32 %v897, %v901
    %v904 = vadd.f32 %v898, %v902
    %905 = vrot.lane.b32.xlu0 %v903, 112
    %v906 = vpop.permute.xlu0 %905
    %907 = vrot.lane.b32.xlu0 %v904, 112
    %v908 = vpop.permute.xlu0 %907
    %v909 = vsel %vm323, %v906, %v908
    %v910 = vsel %vm323, %v908, %v906
    %v911 = vmul.f32 %v909, %v330
    %v912 = vmul.f32 %v910, %v334
    %v913 = vadd.f32 %v873, %v911
    %v914 = vadd.f32 %v874, %v912
    %s915 = sld [smem:[#allocation7 + $0x10]]
    %v916 = vstv %s915
    %v917 = vmul.f32 %v916, %v747
    %v918 = vmul.f32 %v916, %v748
    %s919 = sld [smem:[#allocation7 + $0x11]]
    %v920 = vstv %s919
    %v921 = vmul.f32 %v920, %v754
    %v922 = vmul.f32 %v920, %v760
    %v923 = vadd.f32 %v917, %v921
    %v924 = vadd.f32 %v918, %v922
    %925 = vrot.lane.b32.xlu0 %v923, 111
    %v926 = vpop.permute.xlu0 %925
    %927 = vrot.lane.b32.xlu0 %v924, 111
    %v928 = vpop.permute.xlu0 %927
    %v929 = vsel %vm361, %v926, %v928
    %v930 = vsel %vm361, %v928, %v926
    %v931 = vmul.f32 %v929, %v368
    %v932 = vmul.f32 %v930, %v372
    %v933 = vadd.f32 %v893, %v931
    %v934 = vadd.f32 %v894, %v932
    %v935 = vadd.f32 %v933, %v913
    %v936 = vadd.f32 %v934, %v914
    %v937 = vxor.u32 %v935, 2147483648
    %v938 = vxor.u32 %v936, 2147483648
    %v939 = vmul.f32 %v937, 1.442695
    %v940 = vpow.pop %v939
    %v941 = vmul.f32 %v938, 1.442695
    %v942 = vpow.pop %v941
    %v943 = vadd.f32 %v940, 1.0
    %v944 = vadd.f32 %v942, 1.0
    %v945 = vrcp.pop %v943
    %v946 = vmul.f32 1.0, %v945
    %v947 = vrcp.pop %v944
    %v948 = vmul.f32 1.0, %v947
    %v949 = vlaneseq
    %v950 = vshrl.u32 %v949, 7
    %v951 = vsub.s32 0, %v950
    %v952 = vrot.slane %v946, %v951
    %v953 = vlaneseq
    %v954 = vshrl.u32 %v953, 7
    %v955 = vsub.s32 0, %v954
    %v956 = vrot.slane %v948, %v955
    %v957 = vmul.f32 %v733, %v952
    %v958 = vmul.f32 %v734, %v956
    %v959 = vadd.f32 %v957, %v640
    %v960 = vadd.f32 %v958, %v642
    %v961 = vmax.f32 %v959, 0.0
    %v962 = vmax.f32 %v960, 0.0
    %963 = vst [vmem:[#allocation8] sm:$0xff] %v961
    %964 = vst [vmem:[#allocation8 + $0x8] sm:$0xff] %v962
    %v965 = vmax.f32 %v679, 0.0
    %v966 = vmax.f32 %v681, 0.0
    %v967 = vadd.f32 %v965, %v966
    %968 = vadd.xlane.f32.xlu0 %v967
    %v969 = vpop.xlane.xlu0 %968
    %v970 = vmul.f32 %v969, %v694
    %v971 = vmax.f32 %v965, %v966
    %972 = vmax.xlane.f32.xlu0 %v971
    %v973 = vpop.xlane.xlu0 %972
    %v974 = vmul.f32 %v687, %v970
    %v975 = vsel %vm700, %v974, 0.0
    %v976 = vrot.slane %v975, 4
    %v977 = vadd.f32 %v975, %v976
    %v978 = vrot.slane %v977, 2
    %v979 = vadd.f32 %v977, %v978
    %v980 = vrot.slane %v979, 1
    %v981 = vadd.f32 %v979, %v980
    %v982 = vmax.f32 %v981, 0.0
    %v983 = vmul.f32 %v688, %v982
    %v984 = vsel %vm700, %v983, 0.0
    %985 = vadd.xlane.f32.xlu0 %v984
    %v986 = vpop.xlane.xlu0 %985
    %v987 = vmul.f32 %v687, %v973
    %v988 = vsel %vm700, %v987, 0.0
    %v989 = vrot.slane %v988, 4
    %v990 = vadd.f32 %v988, %v989
    %v991 = vrot.slane %v990, 2
    %v992 = vadd.f32 %v990, %v991
    %v993 = vrot.slane %v992, 1
    %v994 = vadd.f32 %v992, %v993
    %v995 = vmax.f32 %v994, 0.0
    %v996 = vmul.f32 %v688, %v995
    %v997 = vsel %vm700, %v996, 0.0
    %998 = vadd.xlane.f32.xlu0 %v997
    %v999 = vpop.xlane.xlu0 %998
    %v1000 = vadd.f32 %v986, %v999
    %v1001 = vxor.u32 %v1000, 2147483648
    %v1002 = vmul.f32 %v1001, 1.442695
    %v1003 = vpow.pop %v1002
    %v1004 = vadd.f32 %v1003, 1.0
    %v1005 = vrcp.pop %v1004
    %v1006 = vmul.f32 1.0, %v1005
    %v1007 = vmul.f32 %v965, %v1006
    %v1008 = vmul.f32 %v966, %v1006
    %v1009 = vrot.slane %v1007, 4
    %v1010 = vadd.f32 %v1007, %v1009
    %v1011 = vrot.slane %v1010, 2
    %v1012 = vadd.f32 %v1010, %v1011
    %v1013 = vrot.slane %v1012, 1
    %v1014 = vadd.f32 %v1012, %v1013
    %v1015 = vrot.slane %v1008, 4
    %v1016 = vadd.f32 %v1008, %v1015
    %v1017 = vrot.slane %v1016, 2
    %v1018 = vadd.f32 %v1016, %v1017
    %v1019 = vrot.slane %v1018, 1
    %v1020 = vadd.f32 %v1018, %v1019
    %v1021 = vmul.f32 %v1014, 0.125
    %v1022 = vmul.f32 %v1020, 0.125
    %v1023 = vrot.slane %v1007, 4
    %v1024 = vmax.f32 %v1007, %v1023
    %v1025 = vrot.slane %v1024, 2
    %v1026 = vmax.f32 %v1024, %v1025
    %v1027 = vrot.slane %v1026, 1
    %v1028 = vmax.f32 %v1026, %v1027
    %v1029 = vrot.slane %v1008, 4
    %v1030 = vmax.f32 %v1008, %v1029
    %v1031 = vrot.slane %v1030, 2
    %v1032 = vmax.f32 %v1030, %v1031
    %v1033 = vrot.slane %v1032, 1
    %v1034 = vmax.f32 %v1032, %v1033
    %s1035 = sld [smem:[#allocation7]]
    %v1036 = vstv %s1035
    %v1037 = vmul.f32 %v1036, %v1021
    %v1038 = vmul.f32 %v1036, %v1022
    %s1039 = sld [smem:[#allocation7 + $0x1]]
    %v1040 = vstv %s1039
    %v1041 = vmul.f32 %v1040, %v1028
    %v1042 = vmul.f32 %v1040, %v1034
    %v1043 = vadd.f32 %v1037, %v1041
    %v1044 = vadd.f32 %v1038, %v1042
    %1045 = vrot.lane.b32.xlu0 %v1043, 17
    %v1046 = vpop.permute.xlu0 %1045
    %1047 = vrot.lane.b32.xlu0 %v1044, 17
    %v1048 = vpop.permute.xlu0 %1047
    %v1049 = vsel %vm80, %v1046, %v1048
    %v1050 = vsel %vm80, %v1048, %v1046
    %v1051 = vmul.f32 %v1050, %v87
    %v1052 = vmul.f32 %v1049, %v91
    %v1053 = vadd.f32 %v1051, 0.0
    %v1054 = vadd.f32 %v1052, 0.0
    %s1055 = sld [smem:[#allocation7 + $0x2]]
    %v1056 = vstv %s1055
    %v1057 = vmul.f32 %v1056, %v1021
    %v1058 = vmul.f32 %v1056, %v1022
    %s1059 = sld [smem:[#allocation7 + $0x3]]
    %v1060 = vstv %s1059
    %v1061 = vmul.f32 %v1060, %v1028
    %v1062 = vmul.f32 %v1060, %v1034
    %v1063 = vadd.f32 %v1057, %v1061
    %v1064 = vadd.f32 %v1058, %v1062
    %1065 = vrot.lane.b32.xlu0 %v1063, 16
    %v1066 = vpop.permute.xlu0 %1065
    %1067 = vrot.lane.b32.xlu0 %v1064, 16
    %v1068 = vpop.permute.xlu0 %1067
    %v1069 = vsel %vm118, %v1066, %v1068
    %v1070 = vsel %vm118, %v1068, %v1066
    %v1071 = vmul.f32 %v1070, %v125
    %v1072 = vmul.f32 %v1069, %v129
    %v1073 = vadd.f32 %v1071, 0.0
    %v1074 = vadd.f32 %v1072, 0.0
    %s1075 = sld [smem:[#allocation7 + $0x4]]
    %v1076 = vstv %s1075
    %v1077 = vmul.f32 %v1076, %v1021
    %v1078 = vmul.f32 %v1076, %v1022
    %s1079 = sld [smem:[#allocation7 + $0x5]]
    %v1080 = vstv %s1079
    %v1081 = vmul.f32 %v1080, %v1028
    %v1082 = vmul.f32 %v1080, %v1034
    %v1083 = vadd.f32 %v1077, %v1081
    %v1084 = vadd.f32 %v1078, %v1082
    %1085 = vrot.lane.b32.xlu0 %v1083, 15
    %v1086 = vpop.permute.xlu0 %1085
    %1087 = vrot.lane.b32.xlu0 %v1084, 15
    %v1088 = vpop.permute.xlu0 %1087
    %v1089 = vsel %vm156, %v1086, %v1088
    %v1090 = vsel %vm156, %v1088, %v1086
    %v1091 = vmul.f32 %v1090, %v163
    %v1092 = vmul.f32 %v1089, %v167
    %v1093 = vadd.f32 %v1053, %v1091
    %v1094 = vadd.f32 %v1054, %v1092
    %s1095 = sld [smem:[#allocation7 + $0x6]]
    %v1096 = vstv %s1095
    %v1097 = vmul.f32 %v1096, %v1021
    %v1098 = vmul.f32 %v1096, %v1022
    %s1099 = sld [smem:[#allocation7 + $0x7]]
    %v1100 = vstv %s1099
    %v1101 = vmul.f32 %v1100, %v1028
    %v1102 = vmul.f32 %v1100, %v1034
    %v1103 = vadd.f32 %v1097, %v1101
    %v1104 = vadd.f32 %v1098, %v1102
    %1105 = vrot.lane.b32.xlu0 %v1103, 1
    %v1106 = vpop.permute.xlu0 %1105
    %1107 = vrot.lane.b32.xlu0 %v1104, 1
    %v1108 = vpop.permute.xlu0 %1107
    %v1109 = vsel %vm194, %v1106, %v1108
    %v1110 = vsel %vm194, %v1108, %v1106
    %v1111 = vmul.f32 %v1110, %v201
    %v1112 = vmul.f32 %v1109, %v205
    %v1113 = vadd.f32 %v1073, %v1111
    %v1114 = vadd.f32 %v1074, %v1112
    %s1115 = sld [smem:[#allocation7 + $0x8]]
    %v1116 = vstv %s1115
    %v1117 = vmul.f32 %v1116, %v1021
    %v1118 = vmul.f32 %v1116, %v1022
    %s1119 = sld [smem:[#allocation7 + $0x9]]
    %v1120 = vstv %s1119
    %v1121 = vmul.f32 %v1120, %v1028
    %v1122 = vmul.f32 %v1120, %v1034
    %v1123 = vadd.f32 %v1117, %v1121
    %v1124 = vadd.f32 %v1118, %v1122
    %v1125 = vmul.f32 %v1123, %v232
    %v1126 = vmul.f32 %v1124, %v236
    %v1127 = vadd.f32 %v1093, %v1125
    %v1128 = vadd.f32 %v1094, %v1126
    %s1129 = sld [smem:[#allocation7 + $0xa]]
    %v1130 = vstv %s1129
    %v1131 = vmul.f32 %v1130, %v1021
    %v1132 = vmul.f32 %v1130, %v1022
    %s1133 = sld [smem:[#allocation7 + $0xb]]
    %v1134 = vstv %s1133
    %v1135 = vmul.f32 %v1134, %v1028
    %v1136 = vmul.f32 %v1134, %v1034
    %v1137 = vadd.f32 %v1131, %v1135
    %v1138 = vadd.f32 %v1132, %v1136
    %1139 = vrot.lane.b32.xlu0 %v1137, 127
    %v1140 = vpop.permute.xlu0 %1139
    %1141 = vrot.lane.b32.xlu0 %v1138, 127
    %v1142 = vpop.permute.xlu0 %1141
    %v1143 = vsel %vm247, %v1140, %v1142
    %v1144 = vsel %vm247, %v1142, %v1140
    %v1145 = vmul.f32 %v1143, %v254
    %v1146 = vmul.f32 %v1144, %v258
    %v1147 = vadd.f32 %v1113, %v1145
    %v1148 = vadd.f32 %v1114, %v1146
    %s1149 = sld [smem:[#allocation7 + $0xc]]
    %v1150 = vstv %s1149
    %v1151 = vmul.f32 %v1150, %v1021
    %v1152 = vmul.f32 %v1150, %v1022
    %s1153 = sld [smem:[#allocation7 + $0xd]]
    %v1154 = vstv %s1153
    %v1155 = vmul.f32 %v1154, %v1028
    %v1156 = vmul.f32 %v1154, %v1034
    %v1157 = vadd.f32 %v1151, %v1155
    %v1158 = vadd.f32 %v1152, %v1156
    %1159 = vrot.lane.b32.xlu0 %v1157, 113
    %v1160 = vpop.permute.xlu0 %1159
    %1161 = vrot.lane.b32.xlu0 %v1158, 113
    %v1162 = vpop.permute.xlu0 %1161
    %v1163 = vsel %vm285, %v1160, %v1162
    %v1164 = vsel %vm285, %v1162, %v1160
    %v1165 = vmul.f32 %v1163, %v292
    %v1166 = vmul.f32 %v1164, %v296
    %v1167 = vadd.f32 %v1127, %v1165
    %v1168 = vadd.f32 %v1128, %v1166
    %s1169 = sld [smem:[#allocation7 + $0xe]]
    %v1170 = vstv %s1169
    %v1171 = vmul.f32 %v1170, %v1021
    %v1172 = vmul.f32 %v1170, %v1022
    %s1173 = sld [smem:[#allocation7 + $0xf]]
    %v1174 = vstv %s1173
    %v1175 = vmul.f32 %v1174, %v1028
    %v1176 = vmul.f32 %v1174, %v1034
    %v1177 = vadd.f32 %v1171, %v1175
    %v1178 = vadd.f32 %v1172, %v1176
    %1179 = vrot.lane.b32.xlu0 %v1177, 112
    %v1180 = vpop.permute.xlu0 %1179
    %1181 = vrot.lane.b32.xlu0 %v1178, 112
    %v1182 = vpop.permute.xlu0 %1181
    %v1183 = vsel %vm323, %v1180, %v1182
    %v1184 = vsel %vm323, %v1182, %v1180
    %v1185 = vmul.f32 %v1183, %v330
    %v1186 = vmul.f32 %v1184, %v334
    %v1187 = vadd.f32 %v1147, %v1185
    %v1188 = vadd.f32 %v1148, %v1186
    %s1189 = sld [smem:[#allocation7 + $0x10]]
    %v1190 = vstv %s1189
    %v1191 = vmul.f32 %v1190, %v1021
    %v1192 = vmul.f32 %v1190, %v1022
    %s1193 = sld [smem:[#allocation7 + $0x11]]
    %v1194 = vstv %s1193
    %v1195 = vmul.f32 %v1194, %v1028
    %v1196 = vmul.f32 %v1194, %v1034
    %v1197 = vadd.f32 %v1191, %v1195
    %v1198 = vadd.f32 %v1192, %v1196
    %1199 = vrot.lane.b32.xlu0 %v1197, 111
    %v1200 = vpop.permute.xlu0 %1199
    %1201 = vrot.lane.b32.xlu0 %v1198, 111
    %v1202 = vpop.permute.xlu0 %1201
    %v1203 = vsel %vm361, %v1200, %v1202
    %v1204 = vsel %vm361, %v1202, %v1200
    %v1205 = vmul.f32 %v1203, %v368
    %v1206 = vmul.f32 %v1204, %v372
    %v1207 = vadd.f32 %v1167, %v1205
    %v1208 = vadd.f32 %v1168, %v1206
    %v1209 = vadd.f32 %v1207, %v1187
    %v1210 = vadd.f32 %v1208, %v1188
    %v1211 = vxor.u32 %v1209, 2147483648
    %v1212 = vxor.u32 %v1210, 2147483648
    %v1213 = vmul.f32 %v1211, 1.442695
    %v1214 = vpow.pop %v1213
    %v1215 = vmul.f32 %v1212, 1.442695
    %v1216 = vpow.pop %v1215
    %v1217 = vadd.f32 %v1214, 1.0
    %v1218 = vadd.f32 %v1216, 1.0
    %v1219 = vrcp.pop %v1217
    %v1220 = vmul.f32 1.0, %v1219
    %v1221 = vrcp.pop %v1218
    %v1222 = vmul.f32 1.0, %v1221
    %v1223 = vlaneseq
    %v1224 = vshrl.u32 %v1223, 7
    %v1225 = vsub.s32 0, %v1224
    %v1226 = vrot.slane %v1220, %v1225
    %v1227 = vlaneseq
    %v1228 = vshrl.u32 %v1227, 7
    %v1229 = vsub.s32 0, %v1228
    %v1230 = vrot.slane %v1222, %v1229
    %v1231 = vmul.f32 %v1007, %v1226
    %v1232 = vmul.f32 %v1008, %v1230
    %v1233 = vadd.f32 %v1231, %v683
    %v1234 = vadd.f32 %v1232, %v685
    %v1235 = vmax.f32 %v1233, 0.0
    %v1236 = vmax.f32 %v1234, 0.0
    %s1237 = scalar_lea.vmem [#allocation8], 16
    %1238 = vst [vmem:[%s1237] sm:$0xff] %v1235
    %1239 = vst [vmem:[%s1237 + $0x8] sm:$0xff] %v1236
    // Predicated region
    $region38: #{tpu_custom_call.1} parent=1 // pred_check
      _
    $region39: #{tpu_custom_call.1} parent=1 // pred_check_branch
      %1241 = sbr.rel (0) target = $region41
    $region40: #{tpu_custom_call.1} parent=1 // pred_region
      %s1243 = ssub.s32 512, 512
      %1244 = vsyncadd [#allocation5], %s1243
      %s1245 = sshll.u32 [#allocation8], 4
      %s1246 = int_to_ptr.vmem [resolvable:$true] %s1245
      %1251 = dma.vmem_to_hbm [thread:$0]  %s1246, 512, %s7, [#allocation5], 256, 256, 16
    $region41: #{tpu_custom_call.1} parent=1 // pred_fallthru
      _
    // Predicated region
    $region42: #{tpu_custom_call.1} parent=1 // pred_check
      _
    $region43: #{tpu_custom_call.1} parent=1 // pred_check_branch
      %1253 = sbr.rel (0) target = $region45
    $region44: #{tpu_custom_call.1} parent=1 // pred_region
      %1254 = dma.done [#allocation5], 512
    $region45: #{tpu_custom_call.1} parent=1 // pred_fallthru
      _
    %1255 = vsyncpa [#allocation4], 1
    %1256 = vsyncpa [#allocation5], 1
    %1257 = vsyncpa [#allocation6], 1

</llo_original>
